<compile_context>
chip_gen: v7x
topology: tpu7x:2x2x1
jax: 0.10.0
libtpu: 0.0.40
codegen_flags: <defaults>
</compile_context>

<pallas_src>
import jax
import jax.numpy as jnp
from jax.experimental import pallas as pl
from jax.experimental.pallas import tpu as pltpu

EPS = 1e-5


def _pick_row_tile(m, target=512):
    """Largest row tile <= target that is a multiple of 8 and divides m."""
    t = min(target, m)
    t -= t % 8
    while t >= 8:
        if m % t == 0:
            return t
        t -= 8
    return m


# ---- Kernel 1: BN1 + ReLU + 1x1 conv (matmul) + partial BN2 statistics -----
def bn_relu_conv1x1_stats_kernel(x_ref, scale_ref, shift_ref, w_ref,
                                 h_ref, sum_ref, ssq_ref):
    # x_ref: (TM, Cin) f32   scale/shift: (1, Cin) f32   w_ref: (Cin, inner) bf16
    # h_ref: (TM, inner) bf16   sum_ref/ssq_ref: (8, inner) f32 per-tile partials
    y = jnp.maximum(x_ref[...] * scale_ref[...] + shift_ref[...], 0.0)
    h = jnp.dot(y.astype(jnp.bfloat16), w_ref[...],
                preferred_element_type=jnp.float32)
    h_ref[...] = h.astype(h_ref.dtype)
    # Per-tile partial BN2 stats (finalized in f32 glue outside the kernel).
    sum_ref[...] = jnp.broadcast_to(
        jnp.sum(h, axis=0, keepdims=True), sum_ref.shape)
    ssq_ref[...] = jnp.broadcast_to(
        jnp.sum(h * h, axis=0, keepdims=True), ssq_ref.shape)


# ---- Kernel 2: BN2 + ReLU + 3x3 conv (im2col matmul) + fused channel concat --
def bn_relu_conv3x3_concat_kernel(x_ref, h_ref, scale_ref, shift_ref, w_ref,
                                  o_ref):
    # x_ref: (1, H, W, Cin) f32   h_ref: (1, H, W, C) bf16
    # scale/shift: (1, C) f32     w_ref: (9*C, G) bf16
    # o_ref: (1, H, W, Cin+G) f32
    _, H, W, C = h_ref.shape
    G = w_ref.shape[1]

    # BN2 + ReLU in f32 (no bf16 VALU on v5e); cast only the MXU operand.
    z = jnp.maximum(h_ref[0].astype(jnp.float32) * scale_ref[...]
                    + shift_ref[...], 0.0).astype(jnp.bfloat16)

    # 1-pixel zero halo via concatenation (no padded scratch, no full zero-fill).
    zr = jnp.zeros((1, W, C), jnp.bfloat16)
    zp = jnp.concatenate([zr, z, zr], axis=0)              # (H+2, W, C)
    zc = jnp.zeros((H + 2, 1, C), jnp.bfloat16)
    zp = jnp.concatenate([zc, zp, zc], axis=1)             # (H+2, W+2, C)

    # im2col: a single (H*W, 9*C) x (9*C, G) MXU matmul instead of 9 tiny ones.
    taps = [zp[kh:kh + H, kw:kw + W, :]
            for kh in range(3) for kw in range(3)]
    patch = jnp.concatenate(taps, axis=-1).reshape(H * W, 9 * C)
    conv = jnp.dot(patch, w_ref[...], preferred_element_type=jnp.float32)
    conv = conv.reshape(H, W, G)

    # Fused concat: write the whole (Cin+G)-channel output slab in one pass.
    o_ref[0] = jnp.concatenate([x_ref[0], conv], axis=-1)


# ------------------------------- Wrapper -------------------------------------
def bottleneck_forward(x_nchw, gamma1, beta1, w1_oihw, gamma2, beta2, w2_oihw):
    N, Cin, H, W = x_nchw.shape
    inner = w1_oihw.shape[0]
    growth = w2_oihw.shape[0]
    M = N * H * W

    # TODO(synk): keep channels-last across DenseNet layers to drop the
    # NCHW<->NHWC relayouts at the boundaries.
    x_nhwc = jnp.transpose(x_nchw, (0, 2, 3, 1)).astype(jnp.float32)
    x_flat = x_nhwc.reshape(M, Cin)

    # BN1 batch statistics (an up-front pass over x is unavoidable for
    # training-mode BN; normalization itself happens inside kernel 1).
    mean1 = jnp.mean(x_flat, axis=0)
    var1 = jnp.var(x_flat, axis=0)                 # biased, like PyTorch BN
    s1 = gamma1 / jnp.sqrt(var1 + EPS)
    scale1 = s1.reshape(1, Cin)
    shift1 = (beta1 - mean1 * s1).reshape(1, Cin)

    w1_mat = jnp.transpose(w1_oihw[:, :, 0, 0], (1, 0)).astype(jnp.bfloat16)

    TM = _pick_row_tile(M, target=512)
    n_tiles = M // TM
    cparams = pltpu.CompilerParams(
        dimension_semantics=("parallel",),
        vmem_limit_bytes=32 * 1024 * 1024)

    h_flat, psum, pssq = pl.pallas_call(
        bn_relu_conv1x1_stats_kernel,
        grid=(n_tiles,),
        in_specs=[
            pl.BlockSpec((TM, Cin), lambda i: (i, 0)),
            pl.BlockSpec((1, Cin), lambda i: (0, 0)),
            pl.BlockSpec((1, Cin), lambda i: (0, 0)),
            pl.BlockSpec((Cin, inner), lambda i: (0, 0)),
        ],
        out_specs=[
            pl.BlockSpec((TM, inner), lambda i: (i, 0)),
            pl.BlockSpec((8, inner), lambda i: (i, 0)),
            pl.BlockSpec((8, inner), lambda i: (i, 0)),
        ],
        out_shape=[
            jax.ShapeDtypeStruct((M, inner), jnp.bfloat16),
            jax.ShapeDtypeStruct((n_tiles * 8, inner), jnp.float32),
            jax.ShapeDtypeStruct((n_tiles * 8, inner), jnp.float32),
        ],
        compiler_params=cparams,
    )(x_flat, scale1, shift1, w1_mat)

    # Finish BN2 statistics from the fused per-tile partials (no extra HBM
    # reduction pass over h). f32 accumulation; clamp tiny negative variance.
    sums = psum.reshape(n_tiles, 8, inner)[:, 0, :].sum(axis=0)
    ssqs = pssq.reshape(n_tiles, 8, inner)[:, 0, :].sum(axis=0)
    mean2 = sums / M
    var2 = jnp.maximum(ssqs / M - mean2 * mean2, 0.0)
    s2 = gamma2 / jnp.sqrt(var2 + EPS)
    scale2 = s2.reshape(1, inner)
    shift2 = (beta2 - mean2 * s2).reshape(1, inner)

    h_nhwc = h_flat.reshape(N, H, W, inner)
    # (G, C, 3, 3) OIHW -> (3, 3, C, G) -> (9*C, G), matching im2col order.
    w2_mat = jnp.transpose(w2_oihw, (2, 3, 1, 0)).reshape(9 * inner, growth)
    w2_mat = w2_mat.astype(jnp.bfloat16)

    ctot = Cin + growth
    # TODO(synk): for large H*W, tile spatially with a 1-row halo instead of
    # one full image per grid step.
    out_nhwc = pl.pallas_call(
        bn_relu_conv3x3_concat_kernel,
        grid=(N,),
        in_specs=[
            pl.BlockSpec((1, H, W, Cin), lambda n: (n, 0, 0, 0)),
            pl.BlockSpec((1, H, W, inner), lambda n: (n, 0, 0, 0)),
            pl.BlockSpec((1, inner), lambda n: (0, 0)),
            pl.BlockSpec((1, inner), lambda n: (0, 0)),
            pl.BlockSpec((9 * inner, growth), lambda n: (0, 0)),
        ],
        out_specs=pl.BlockSpec((1, H, W, ctot), lambda n: (n, 0, 0, 0)),
        out_shape=jax.ShapeDtypeStruct((N, H, W, ctot), jnp.float32),
        compiler_params=cparams,
    )(x_nhwc, h_nhwc, scale2, shift2, w2_mat)

    return jnp.transpose(out_nhwc, (0, 3, 1, 2))     # back to NCHW


# --------------------------- Pure-JAX reference -------------------------------
def bottleneck_reference(x, gamma1, beta1, w1, gamma2, beta2, w2):
    def bn_train(v, gamma, beta):
        m = jnp.mean(v, axis=(0, 2, 3), keepdims=True)
        var = jnp.var(v, axis=(0, 2, 3), keepdims=True)
        return ((v - m) / jnp.sqrt(var + EPS)) * gamma[None, :, None, None] \
               + beta[None, :, None, None]

    y = jax.nn.relu(bn_train(x, gamma1, beta1))
    h = jax.lax.conv_general_dilated(y, w1, (1, 1), 'VALID',
                                     dimension_numbers=('NCHW', 'OIHW', 'NCHW'))
    z = jax.nn.relu(bn_train(h, gamma2, beta2))
    o = jax.lax.conv_general_dilated(z, w2, (1, 1), ((1, 1), (1, 1)),
                                     dimension_numbers=('NCHW', 'OIHW', 'NCHW'))
    return jnp.concatenate([x, o], axis=1)


if __name__ == "__main__":
    key = jax.random.PRNGKey(0)
    k1, k2, k3 = jax.random.split(key, 3)

    N, Cin, H, W = 4, 8, 16, 16
    growth_rate = 4
    inner = 4 * growth_rate

    x = jax.random.normal(k1, (N, Cin, H, W), jnp.float32)
    # Deterministic synthetic parameters (shapes from nn.Conv2d / nn.BatchNorm2d).
    w1 = 0.1 * jax.random.normal(k2, (inner, Cin, 1, 1), jnp.float32)          # OIHW
    w2 = 0.1 * jax.random.normal(k3, (growth_rate, inner, 3, 3), jnp.float32)  # OIHW
    gamma1 = jnp.ones((Cin,), jnp.float32)
    beta1 = jnp.zeros((Cin,), jnp.float32)
    gamma2 = jnp.ones((inner,), jnp.float32)
    beta2 = jnp.zeros((inner,), jnp.float32)

    out = jax.block_until_ready(
        bottleneck_forward(x, gamma1, beta1, w1, gamma2, beta2, w2))

    ref = bottleneck_reference(x, gamma1, beta1, w1, gamma2, beta2, w2)
    assert out.shape == (N, Cin + growth_rate, H, W), out.shape
    max_err = float(jnp.max(jnp.abs(out - ref)))
    # bf16 MXU operands (f32 accumulation) => tolerance loosened vs f32 ref.
    assert max_err < 5e-2, f"max abs error {max_err}"

    print("KERNEL_OK")
</pallas_src>

<mosaic_0001>
module attributes {stable_mosaic.version = 11 : i64} {
  func.func @bn_relu_conv1x1_stats_kernel(%arg0: i32, %arg1: memref<512x8xf32, #tpu.memory_space<vmem>>, %arg2: memref<1x8xf32, #tpu.memory_space<vmem>>, %arg3: memref<1x8xf32, #tpu.memory_space<vmem>>, %arg4: memref<8x16xbf16, #tpu.memory_space<vmem>>, %arg5: memref<512x16xbf16, #tpu.memory_space<vmem>>, %arg6: memref<8x16xf32, #tpu.memory_space<vmem>>, %arg7: memref<8x16xf32, #tpu.memory_space<vmem>>) attributes {dimension_semantics = [#tpu.dimension_semantics<parallel>], iteration_bounds = array<i64: 2>, scalar_prefetch = 0 : i64, scratch_operands = 0 : i64, tpu.core_type = #tpu.core_type<tc>, window_params = [{transform_indices = @transform_0, window_bounds = array<i64: 512, 8>}, {pipeline_mode = #tpu.pipeline_mode<synchronous>, transform_indices = @transform_1, window_bounds = array<i64: 1, 8>}, {pipeline_mode = #tpu.pipeline_mode<synchronous>, transform_indices = @transform_2, window_bounds = array<i64: 1, 8>}, {pipeline_mode = #tpu.pipeline_mode<synchronous>, transform_indices = @transform_3, window_bounds = array<i64: 8, 16>}, {transform_indices = @transform_4, window_bounds = array<i64: 512, 16>}, {transform_indices = @transform_5, window_bounds = array<i64: 8, 16>}, {transform_indices = @transform_6, window_bounds = array<i64: 8, 16>}]} {
    %c0 = arith.constant 0 : index
    %c0_0 = arith.constant 0 : index
    %0 = vector.load %arg1[%c0, %c0_0] : memref<512x8xf32, #tpu.memory_space<vmem>>, vector<512x8xf32>
    %c0_1 = arith.constant 0 : index
    %c0_2 = arith.constant 0 : index
    %1 = vector.load %arg2[%c0_1, %c0_2] : memref<1x8xf32, #tpu.memory_space<vmem>>, vector<1x8xf32>
    %2 = vector.broadcast %1 : vector<1x8xf32> to vector<512x8xf32>
    %3 = arith.mulf %0, %2 : vector<512x8xf32>
    %c0_3 = arith.constant 0 : index
    %c0_4 = arith.constant 0 : index
    %4 = vector.load %arg3[%c0_3, %c0_4] : memref<1x8xf32, #tpu.memory_space<vmem>>, vector<1x8xf32>
    %5 = vector.broadcast %4 : vector<1x8xf32> to vector<512x8xf32>
    %6 = arith.addf %3, %5 : vector<512x8xf32>
    %cst = arith.constant 0.000000e+00 : f32
    %7 = vector.broadcast %cst : f32 to vector<512x8xf32>
    %8 = arith.maximumf %6, %7 : vector<512x8xf32>
    %9 = arith.truncf %8 : vector<512x8xf32> to vector<512x8xbf16>
    %c0_5 = arith.constant 0 : index
    %c0_6 = arith.constant 0 : index
    %10 = vector.load %arg4[%c0_5, %c0_6] : memref<8x16xbf16, #tpu.memory_space<vmem>>, vector<8x16xbf16>
    %cst_7 = arith.constant dense<0.000000e+00> : vector<512x16xf32>
    %11 = tpu.matmul %9, %10, %cst_7 {dimension_numbers = #tpu.dot_dimension_numbers<[1], [0], [0], [1], [0, 0, 1, 1], [], []>} : vector<512x8xbf16>, vector<8x16xbf16>, vector<512x16xf32> -> vector<512x16xf32>
    %12 = arith.truncf %11 : vector<512x16xf32> to vector<512x16xbf16>
    %c0_8 = arith.constant 0 : index
    %c0_9 = arith.constant 0 : index
    %13 = vector.load %arg5[%c0_8, %c0_9] : memref<512x16xbf16, #tpu.memory_space<vmem>>, vector<512x16xbf16>
    tpu.vector_store %arg5[%c0_8, %c0_9], %12 {strides = array<i32>} : memref<512x16xbf16, #tpu.memory_space<vmem>>, vector<512x16xbf16>,
    %cst_10 = arith.constant dense<0.000000e+00> : vector<16xf32>
    %14 = vector.multi_reduction <add>, %11, %cst_10 [0] : vector<512x16xf32> to vector<16xf32>
    %15 = vector.shape_cast %14 : vector<16xf32> to vector<1x16xf32>
    %16 = vector.shape_cast %15 : vector<1x16xf32> to vector<1x16xf32>
    %17 = vector.broadcast %16 : vector<1x16xf32> to vector<8x16xf32>
    %c0_11 = arith.constant 0 : index
    %c0_12 = arith.constant 0 : index
    %18 = vector.load %arg6[%c0_11, %c0_12] : memref<8x16xf32, #tpu.memory_space<vmem>>, vector<8x16xf32>
    tpu.vector_store %arg6[%c0_11, %c0_12], %17 {strides = array<i32>} : memref<8x16xf32, #tpu.memory_space<vmem>>, vector<8x16xf32>,
    %19 = arith.mulf %11, %11 : vector<512x16xf32>
    %cst_13 = arith.constant dense<0.000000e+00> : vector<16xf32>
    %20 = vector.multi_reduction <add>, %19, %cst_13 [0] : vector<512x16xf32> to vector<16xf32>
    %21 = vector.shape_cast %20 : vector<16xf32> to vector<1x16xf32>
    %22 = vector.shape_cast %21 : vector<1x16xf32> to vector<1x16xf32>
    %23 = vector.broadcast %22 : vector<1x16xf32> to vector<8x16xf32>
    %c0_14 = arith.constant 0 : index
    %c0_15 = arith.constant 0 : index
    %24 = vector.load %arg7[%c0_14, %c0_15] : memref<8x16xf32, #tpu.memory_space<vmem>>, vector<8x16xf32>
    tpu.vector_store %arg7[%c0_14, %c0_15], %23 {strides = array<i32>} : memref<8x16xf32, #tpu.memory_space<vmem>>, vector<8x16xf32>,
    return
  }
  func.func @transform_0(%arg0: i32) -> (i32, i32) {
    %c0_i32 = arith.constant 0 : i32
    %c0_i32_0 = arith.constant 0 : i32
    return %arg0, %c0_i32 : i32, i32
  }
  func.func @transform_1(%arg0: i32) -> (i32, i32) {
    %c0_i32 = arith.constant 0 : i32
    %c0_i32_0 = arith.constant 0 : i32
    %c0_i32_1 = arith.constant 0 : i32
    return %c0_i32, %c0_i32_0 : i32, i32
  }
  func.func @transform_2(%arg0: i32) -> (i32, i32) {
    %c0_i32 = arith.constant 0 : i32
    %c0_i32_0 = arith.constant 0 : i32
    %c0_i32_1 = arith.constant 0 : i32
    return %c0_i32, %c0_i32_0 : i32, i32
  }
  func.func @transform_3(%arg0: i32) -> (i32, i32) {
    %c0_i32 = arith.constant 0 : i32
    %c0_i32_0 = arith.constant 0 : i32
    %c0_i32_1 = arith.constant 0 : i32
    return %c0_i32, %c0_i32_0 : i32, i32
  }
  func.func @transform_4(%arg0: i32) -> (i32, i32) {
    %c0_i32 = arith.constant 0 : i32
    %c0_i32_0 = arith.constant 0 : i32
    return %arg0, %c0_i32 : i32, i32
  }
  func.func @transform_5(%arg0: i32) -> (i32, i32) {
    %c0_i32 = arith.constant 0 : i32
    %c0_i32_0 = arith.constant 0 : i32
    return %arg0, %c0_i32 : i32, i32
  }
  func.func @transform_6(%arg0: i32) -> (i32, i32) {
    %c0_i32 = arith.constant 0 : i32
    %c0_i32_0 = arith.constant 0 : i32
    return %arg0, %c0_i32 : i32, i32
  }
}

</mosaic_0001>

<llo_original>
// kernel: tpu_custom_call.1
$region0: #{tpu_custom_call.1}
  #allocation0 [shape = 'u32[]', space=smem, size = 0x4, offset = 0x4, fixed_abs, tag = 'smem constant byte address 0x4 - core index']
  #allocation1 [shape = 'u32[144,128]{1,0:T(1,128)}', space=vmem, size = 0x12000, scoped, tag = 'internal scratch']
  %s0 = inlined_call_operand.vmem [shape: f32[1024,8], index: 0, kind: input, shape index: {}]
  %s1 = inlined_call_operand.vmem [shape: f32[1,8], index: 1, kind: input, shape index: {}]
  %s2 = inlined_call_operand.vmem [shape: f32[1,8], index: 2, kind: input, shape index: {}]
  %s3 = inlined_call_operand.vmem [shape: bf16[8,16], index: 3, kind: input, shape index: {}]
  %s4 = inlined_call_operand.vmem [shape: bf16[1024,16], index: 4, kind: output, shape index: {0}]
  %s5 = inlined_call_operand.hbm [shape: f32[16,16], index: 5, kind: output, shape index: {1}]
  %s6 = inlined_call_operand.hbm [shape: f32[16,16], index: 6, kind: output, shape index: {2}]
  %7 = xla_tuple %s4, %s5, %s6
  %s8 = sld [smem:[#allocation0]]
  $region65: #{tpu_custom_call.1} parent=0
    _
  %s10 = ssub.s32 1, %s8
  %s11 = scalar_select 0, %s10, %s8
  $region1: #{tpu_custom_call.1} parent=0
    #allocation2 [shape = 'u8[8192]{0}', space=vmem, size = 0x2000, scoped, tag = 'output window, operand 1']
    #allocation3 [shape = 's32[2]{0}', space=sflag, size = 0x8, scoped, tag = 'scoped memory for tpu_custom_call.1']
    #allocation4 [shape = 'u8[8192]{0}', space=vmem, size = 0x2000, scoped, tag = 'output window, operand 2']
    #allocation5 [shape = 's32[2]{0}', space=sflag, size = 0x8, scoped, tag = 'scoped memory for tpu_custom_call.1']
    %12 = vsyncpa [#allocation3], 0
    %s13 = scalar_lea.sflag [#allocation3], 1
    %14 = vsyncpa %s13, 0
    %15 = vsyncpa [#allocation5], 0
    %s16 = scalar_lea.sflag [#allocation5], 1
    %17 = vsyncpa %s16, 0
    loop: start=0, step=1, limit=4
    $region2: #{tpu_custom_call.1} parent=1 // loop_pre_header
      _
    $region3: #{tpu_custom_call.1} parent=1 // loop_header
      %s19 = sphi 0, %s23
      %p20 = scmp.ge.s32.totalorder %s19, 4
      %s29 = sphi 0, %s31
      %s32 = sphi 0, %s29
      %s33 = sphi 0, %s32
      %s49 = sphi 0, %s33
      %s53 = sphi 0, %s53
      %s55 = sphi 0, %s53
      %s56 = sphi 0, %s55
      %s70 = sphi 0, %s56
      %s74 = sphi 0, %s74
      %s76 = sphi 0, %s74
      %s77 = sphi 0, %s76
      %s91 = sphi 0, %s77
      %s95 = sphi 0, %s95
      %s97 = sphi 0, %s95
      %s98 = sphi 0, %s97
      %s112 = sphi 0, %s98
      %s118 = sphi 0, %s120
      %s121 = sphi 0, %s118
      %s122 = sphi 0, %s121
      %s138 = sphi 0, %s122
      %s144 = sphi 0, %s146
      %s147 = sphi 0, %s144
      %s148 = sphi 0, %s147
      %s164 = sphi 0, %s148
      %s170 = sphi 0, %s172
      %s173 = sphi 0, %s170
      %s174 = sphi 0, %s173
      %s190 = sphi 0, %s174
    $region4: #{tpu_custom_call.1} parent=1 // loop_header_branch
      %22 = sbr.rel (%p20) target = $region8
    $region5: #{tpu_custom_call.1} parent=1 // loop_body
      %s24 = ssub.s32 %s19, 1
      %s25 = ssub.s32 %s19, 2
      %s26 = sadd.s32 %s19, 1
      %s27 = ssub.s32 %s19, %s26
      %p28 = scmp.eq.s32.totalorder %s27, 0
      %s30 = sadd.s32 %s29, 1
      %s31 = scalar_select %p28, %s29, %s30
      %p34 = pneg %p28
      %p35 = scmp.eq.s32.totalorder %s19, 1
      %p36 = por %p34, %p35
      %p37 = scmp.ne.s32.totalorder %s29, %s32
      %p38 = scmp.eq.s32.totalorder %s19, 0
      %p39 = por %p37, %p38
      %p40 = scmp.ne.s32.totalorder %s29, %s32
      %p41 = scmp.eq.s32.totalorder %s24, 1
      %p42 = por %p40, %p41
      %p43 = scmp.ne.s32.totalorder %s32, %s33
      %p44 = scmp.eq.s32.totalorder %s24, 0
      %p45 = por %p43, %p44
      %p46 = scmp.ne.s32.totalorder %s32, %s33
      %p47 = scmp.eq.s32.totalorder %s25, 1
      %p48 = por %p46, %p47
      %p50 = scmp.ne.s32.totalorder %s33, %s49
      %p51 = scmp.eq.s32.totalorder %s25, 0
      %p52 = por %p50, %p51
      %s54 = sadd.s32 %s53, 1
      %p57 = scmp.eq.s32.totalorder %s19, 1
      %p58 = scmp.ne.s32.totalorder %s53, %s55
      %p59 = scmp.eq.s32.totalorder %s19, 0
      %p60 = por %p58, %p59
      %p61 = scmp.ne.s32.totalorder %s53, %s55
      %p62 = scmp.eq.s32.totalorder %s24, 1
      %p63 = por %p61, %p62
      %p64 = scmp.ne.s32.totalorder %s55, %s56
      %p65 = scmp.eq.s32.totalorder %s24, 0
      %p66 = por %p64, %p65
      %p67 = scmp.ne.s32.totalorder %s55, %s56
      %p68 = scmp.eq.s32.totalorder %s25, 1
      %p69 = por %p67, %p68
      %p71 = scmp.ne.s32.totalorder %s56, %s70
      %p72 = scmp.eq.s32.totalorder %s25, 0
      %p73 = por %p71, %p72
      %s75 = sadd.s32 %s74, 1
      %p78 = scmp.eq.s32.totalorder %s19, 1
      %p79 = scmp.ne.s32.totalorder %s74, %s76
      %p80 = scmp.eq.s32.totalorder %s19, 0
      %p81 = por %p79, %p80
      %p82 = scmp.ne.s32.totalorder %s74, %s76
      %p83 = scmp.eq.s32.totalorder %s24, 1
      %p84 = por %p82, %p83
      %p85 = scmp.ne.s32.totalorder %s76, %s77
      %p86 = scmp.eq.s32.totalorder %s24, 0
      %p87 = por %p85, %p86
      %p88 = scmp.ne.s32.totalorder %s76, %s77
      %p89 = scmp.eq.s32.totalorder %s25, 1
      %p90 = por %p88, %p89
      %p92 = scmp.ne.s32.totalorder %s77, %s91
      %p93 = scmp.eq.s32.totalorder %s25, 0
      %p94 = por %p92, %p93
      %s96 = sadd.s32 %s95, 1
      %p99 = scmp.eq.s32.totalorder %s19, 1
      %p100 = scmp.ne.s32.totalorder %s95, %s97
      %p101 = scmp.eq.s32.totalorder %s19, 0
      %p102 = por %p100, %p101
      %p103 = scmp.ne.s32.totalorder %s95, %s97
      %p104 = scmp.eq.s32.totalorder %s24, 1
      %p105 = por %p103, %p104
      %p106 = scmp.ne.s32.totalorder %s97, %s98
      %p107 = scmp.eq.s32.totalorder %s24, 0
      %p108 = por %p106, %p107
      %p109 = scmp.ne.s32.totalorder %s97, %s98
      %p110 = scmp.eq.s32.totalorder %s25, 1
      %p111 = por %p109, %p110
      %p113 = scmp.ne.s32.totalorder %s98, %s112
      %p114 = scmp.eq.s32.totalorder %s25, 0
      %p115 = por %p113, %p114
      %s116 = ssub.s32 %s19, %s26
      %p117 = scmp.eq.s32.totalorder %s116, 0
      %s119 = sadd.s32 %s118, 1
      %s120 = scalar_select %p117, %s118, %s119
      %p123 = pneg %p117
      %p124 = scmp.eq.s32.totalorder %s19, 1
      %p125 = por %p123, %p124
      %p126 = scmp.ne.s32.totalorder %s118, %s121
      %p127 = scmp.eq.s32.totalorder %s19, 0
      %p128 = por %p126, %p127
      %p129 = scmp.ne.s32.totalorder %s118, %s121
      %p130 = scmp.eq.s32.totalorder %s24, 1
      %p131 = por %p129, %p130
      %p132 = scmp.ne.s32.totalorder %s121, %s122
      %p133 = scmp.eq.s32.totalorder %s24, 0
      %p134 = por %p132, %p133
      %p135 = scmp.ne.s32.totalorder %s121, %s122
      %p136 = scmp.eq.s32.totalorder %s25, 1
      %p137 = por %p135, %p136
      %p139 = scmp.ne.s32.totalorder %s122, %s138
      %p140 = scmp.eq.s32.totalorder %s25, 0
      %p141 = por %p139, %p140
      %s142 = ssub.s32 %s19, %s26
      %p143 = scmp.eq.s32.totalorder %s142, 0
      %s145 = sadd.s32 %s144, 1
      %s146 = scalar_select %p143, %s144, %s145
      %p149 = pneg %p143
      %p150 = scmp.eq.s32.totalorder %s19, 1
      %p151 = por %p149, %p150
      %p152 = scmp.ne.s32.totalorder %s144, %s147
      %p153 = scmp.eq.s32.totalorder %s19, 0
      %p154 = por %p152, %p153
      %p155 = scmp.ne.s32.totalorder %s144, %s147
      %p156 = scmp.eq.s32.totalorder %s24, 1
      %p157 = por %p155, %p156
      %p158 = scmp.ne.s32.totalorder %s147, %s148
      %p159 = scmp.eq.s32.totalorder %s24, 0
      %p160 = por %p158, %p159
      %p161 = scmp.ne.s32.totalorder %s147, %s148
      %p162 = scmp.eq.s32.totalorder %s25, 1
      %p163 = por %p161, %p162
      %p165 = scmp.ne.s32.totalorder %s148, %s164
      %p166 = scmp.eq.s32.totalorder %s25, 0
      %p167 = por %p165, %p166
      %s168 = ssub.s32 %s19, %s26
      %p169 = scmp.eq.s32.totalorder %s168, 0
      %s171 = sadd.s32 %s170, 1
      %s172 = scalar_select %p169, %s170, %s171
      %p175 = pneg %p169
      %p176 = scmp.eq.s32.totalorder %s19, 1
      %p177 = por %p175, %p176
      %p178 = scmp.ne.s32.totalorder %s170, %s173
      %p179 = scmp.eq.s32.totalorder %s19, 0
      %p180 = por %p178, %p179
      %p181 = scmp.ne.s32.totalorder %s170, %s173
      %p182 = scmp.eq.s32.totalorder %s24, 1
      %p183 = por %p181, %p182
      %p184 = scmp.ne.s32.totalorder %s173, %s174
      %p185 = scmp.eq.s32.totalorder %s24, 0
      %p186 = por %p184, %p185
      %p187 = scmp.ne.s32.totalorder %s173, %s174
      %p188 = scmp.eq.s32.totalorder %s25, 1
      %p189 = por %p187, %p188
      %p191 = scmp.ne.s32.totalorder %s174, %s190
      %p192 = scmp.eq.s32.totalorder %s25, 0
      %p193 = por %p191, %p192
      %p194 = scmp.le.s32.totalorder 1, %s19
      %p195 = scmp.lt.s32.totalorder %s19, 3
      %p196 = pnand %p194, %p195
      %p197 = pneg %p196
      // Predicated region
      $region9: #{tpu_custom_call.1} parent=5 // pred_check
        _
      $region10: #{tpu_custom_call.1} parent=5 // pred_check_branch
        %199 = sbr.rel (%p196) target = $region12
      $region11: #{tpu_custom_call.1} parent=5 // pred_region
        %s200 = ssub.s32 %s19, 1
        // Predicated region
        $region13: #{tpu_custom_call.1} parent=11 // pred_check
          %p201 = pneg %p66
        $region14: #{tpu_custom_call.1} parent=11 // pred_check_branch
          %203 = sbr.rel (%p201) target = $region16
        $region15: #{tpu_custom_call.1} parent=11 // pred_region
          _
        $region16: #{tpu_custom_call.1} parent=11 // pred_fallthru
          _
        // Predicated region
        $region17: #{tpu_custom_call.1} parent=11 // pred_check
          %p204 = pneg %p87
        $region18: #{tpu_custom_call.1} parent=11 // pred_check_branch
          %206 = sbr.rel (%p204) target = $region20
        $region19: #{tpu_custom_call.1} parent=11 // pred_region
          _
        $region20: #{tpu_custom_call.1} parent=11 // pred_fallthru
          _
        // Predicated region
        $region21: #{tpu_custom_call.1} parent=11 // pred_check
          %p207 = pneg %p108
        $region22: #{tpu_custom_call.1} parent=11 // pred_check_branch
          %209 = sbr.rel (%p207) target = $region24
        $region23: #{tpu_custom_call.1} parent=11 // pred_region
          _
        $region24: #{tpu_custom_call.1} parent=11 // pred_fallthru
          _
      $region12: #{tpu_custom_call.1} parent=5 // pred_fallthru
        _
      %p210 = scmp.lt.s32.totalorder %s19, 2
      // Predicated region
      $region25: #{tpu_custom_call.1} parent=5 // pred_check
        %p211 = pneg %p210
      $region26: #{tpu_custom_call.1} parent=5 // pred_check_branch
        %213 = sbr.rel (%p211) target = $region28
      $region27: #{tpu_custom_call.1} parent=5 // pred_region
        // Predicated region
        $region29: #{tpu_custom_call.1} parent=27 // pred_check
          %p214 = pneg %p39
        $region30: #{tpu_custom_call.1} parent=27 // pred_check_branch
          %216 = sbr.rel (%p214) target = $region32
        $region31: #{tpu_custom_call.1} parent=27 // pred_region
          %s217 = smul.u32 64, %s19
          %p218 = scmp.lt.s32.totalorder %s217, 127
          %s219 = scalar_select %p218, %s217, 127
          %s220 = smul.addr %s219, 8
          %s221 = scalar_lea.vmem %s0, %s220
          %s222 = smul.u32 64, %s19
        $region32: #{tpu_custom_call.1} parent=27 // pred_fallthru
          _
      $region28: #{tpu_custom_call.1} parent=5 // pred_fallthru
        _
      %p223 = scmp.le.s32.totalorder 1, %s19
      %p224 = scmp.lt.s32.totalorder %s19, 3
      %p225 = pnand %p223, %p224
      %p226 = pneg %p225
      // Predicated region
      $region33: #{tpu_custom_call.1} parent=5 // pred_check
        _
      $region34: #{tpu_custom_call.1} parent=5 // pred_check_branch
        %228 = sbr.rel (%p225) target = $region36
      $region35: #{tpu_custom_call.1} parent=5 // pred_region
        %s229 = ssub.s32 %s19, 1
        %s230 = smul.u32 64, %s24
        %p231 = scmp.lt.s32.totalorder %s230, 127
        %s232 = scalar_select %p231, %s230, 127
        %s233 = smul.addr %s232, 8
        %s234 = scalar_lea.vmem %s0, %s233
        %p235 = pneg %p45
        %p236 = pneg %p42
        %p237 = pneg %p66
        %p238 = pneg %p63
        %p239 = pneg %p87
        %p240 = pneg %p84
        %p241 = pneg %p108
        %p242 = pneg %p105
        %p243 = pneg %p134
        %p244 = pneg %p131
        %s245 = smul.u32 64, %s24
        %p246 = scmp.lt.s32.totalorder %s245, 127
        %s247 = scalar_select %p246, %s245, 127
        %s248 = smul.addr %s247, 4
        %s249 = scalar_lea.vmem %s4, %s248
        %p250 = pneg %p160
        %p251 = pneg %p157
        %s252 = sand.u32 %s147, 1
        %s253 = scalar_lea.sflag [#allocation3], %s252
        %s254 = sand.u32 %s147, 1
        %s255 = smul.addr %s254, 8
        %s256 = scalar_lea.vmem [#allocation2], %s255
        %p257 = pneg %p186
        %p258 = pneg %p183
        %s259 = sand.u32 %s173, 1
        %s260 = scalar_lea.sflag [#allocation5], %s259
        %s261 = sand.u32 %s173, 1
        %s262 = smul.addr %s261, 8
        %s263 = scalar_lea.vmem [#allocation4], %s262
        %s264 = smul.u32 64, %s24
        %p265 = scmp.lt.s32.totalorder %s264, 127
        %s266 = scalar_select %p265, %s264, 127
        %s267 = smul.addr %s266, 8
        %s268 = scalar_lea.vmem %s0, %s267
        %s269 = smul.u32 64, %s24
        %s270 = smul.u32 64, %s24
        %p271 = scmp.lt.s32.totalorder %s270, 127
        %s272 = scalar_select %p271, %s270, 127
        %s273 = smul.addr %s272, 4
        %s274 = scalar_lea.vmem %s4, %s273
        %s275 = smul.u32 64, %s24
        %v277 = vld [vmem:[%s268] sm:$0xff]
        %v278 = vld [vmem:[%s268 + $0x8] sm:$0xff]
        %v279 = vld [vmem:[%s268 + $0x10] sm:$0xff]
        %v280 = vld [vmem:[%s268 + $0x18] sm:$0xff]
        %v281 = vld [vmem:[%s268 + $0x20] sm:$0xff]
        %v282 = vld [vmem:[%s268 + $0x28] sm:$0xff]
        %v283 = vld [vmem:[%s268 + $0x30] sm:$0xff]
        %v284 = vld [vmem:[%s268 + $0x38] sm:$0xff]
        %v285 = vld [vmem:[%s268 + $0x40] sm:$0xff]
        %v286 = vld [vmem:[%s268 + $0x48] sm:$0xff]
        %v287 = vld [vmem:[%s268 + $0x50] sm:$0xff]
        %v288 = vld [vmem:[%s268 + $0x58] sm:$0xff]
        %v289 = vld [vmem:[%s268 + $0x60] sm:$0xff]
        %v290 = vld [vmem:[%s268 + $0x68] sm:$0xff]
        %v291 = vld [vmem:[%s268 + $0x70] sm:$0xff]
        %v292 = vld [vmem:[%s268 + $0x78] sm:$0xff]
        %v293 = vld [vmem:[%s268 + $0x80] sm:$0xff]
        %v294 = vld [vmem:[%s268 + $0x88] sm:$0xff]
        %v295 = vld [vmem:[%s268 + $0x90] sm:$0xff]
        %v296 = vld [vmem:[%s268 + $0x98] sm:$0xff]
        %v297 = vld [vmem:[%s268 + $0xa0] sm:$0xff]
        %v298 = vld [vmem:[%s268 + $0xa8] sm:$0xff]
        %v299 = vld [vmem:[%s268 + $0xb0] sm:$0xff]
        %v300 = vld [vmem:[%s268 + $0xb8] sm:$0xff]
        %v301 = vld [vmem:[%s268 + $0xc0] sm:$0xff]
        %v302 = vld [vmem:[%s268 + $0xc8] sm:$0xff]
        %v303 = vld [vmem:[%s268 + $0xd0] sm:$0xff]
        %v304 = vld [vmem:[%s268 + $0xd8] sm:$0xff]
        %v305 = vld [vmem:[%s268 + $0xe0] sm:$0xff]
        %v306 = vld [vmem:[%s268 + $0xe8] sm:$0xff]
        %v307 = vld [vmem:[%s268 + $0xf0] sm:$0xff]
        %v308 = vld [vmem:[%s268 + $0xf8] sm:$0xff]
        %v309 = vld [vmem:[%s268 + $0x100] sm:$0xff]
        %v310 = vld [vmem:[%s268 + $0x108] sm:$0xff]
        %v311 = vld [vmem:[%s268 + $0x110] sm:$0xff]
        %v312 = vld [vmem:[%s268 + $0x118] sm:$0xff]
        %v313 = vld [vmem:[%s268 + $0x120] sm:$0xff]
        %v314 = vld [vmem:[%s268 + $0x128] sm:$0xff]
        %v315 = vld [vmem:[%s268 + $0x130] sm:$0xff]
        %v316 = vld [vmem:[%s268 + $0x138] sm:$0xff]
        %v317 = vld [vmem:[%s268 + $0x140] sm:$0xff]
        %v318 = vld [vmem:[%s268 + $0x148] sm:$0xff]
        %v319 = vld [vmem:[%s268 + $0x150] sm:$0xff]
        %v320 = vld [vmem:[%s268 + $0x158] sm:$0xff]
        %v321 = vld [vmem:[%s268 + $0x160] sm:$0xff]
        %v322 = vld [vmem:[%s268 + $0x168] sm:$0xff]
        %v323 = vld [vmem:[%s268 + $0x170] sm:$0xff]
        %v324 = vld [vmem:[%s268 + $0x178] sm:$0xff]
        %v325 = vld [vmem:[%s268 + $0x180] sm:$0xff]
        %v326 = vld [vmem:[%s268 + $0x188] sm:$0xff]
        %v327 = vld [vmem:[%s268 + $0x190] sm:$0xff]
        %v328 = vld [vmem:[%s268 + $0x198] sm:$0xff]
        %v329 = vld [vmem:[%s268 + $0x1a0] sm:$0xff]
        %v330 = vld [vmem:[%s268 + $0x1a8] sm:$0xff]
        %v331 = vld [vmem:[%s268 + $0x1b0] sm:$0xff]
        %v332 = vld [vmem:[%s268 + $0x1b8] sm:$0xff]
        %v333 = vld [vmem:[%s268 + $0x1c0] sm:$0xff]
        %v334 = vld [vmem:[%s268 + $0x1c8] sm:$0xff]
        %v335 = vld [vmem:[%s268 + $0x1d0] sm:$0xff]
        %v336 = vld [vmem:[%s268 + $0x1d8] sm:$0xff]
        %v337 = vld [vmem:[%s268 + $0x1e0] sm:$0xff]
        %v338 = vld [vmem:[%s268 + $0x1e8] sm:$0xff]
        %v339 = vld [vmem:[%s268 + $0x1f0] sm:$0xff]
        %v340 = vld [vmem:[%s268 + $0x1f8] sm:$0xff]
        %v341 = vld [vmem:[%s1] sm:$0x1]
        %v343 = vlaneseq
        %v344 = vshrl.u32 %v343, 7
        %v345 = vsub.s32 0, %v344
        %v346 = vrot.slane %v341, %v345
        %v348 = vmul.f32 %v277, %v346
        %v349 = vmul.f32 %v278, %v346
        %v350 = vmul.f32 %v279, %v346
        %v351 = vmul.f32 %v280, %v346
        %v352 = vmul.f32 %v281, %v346
        %v353 = vmul.f32 %v282, %v346
        %v354 = vmul.f32 %v283, %v346
        %v355 = vmul.f32 %v284, %v346
        %v356 = vmul.f32 %v285, %v346
        %v357 = vmul.f32 %v286, %v346
        %v358 = vmul.f32 %v287, %v346
        %v359 = vmul.f32 %v288, %v346
        %v360 = vmul.f32 %v289, %v346
        %v361 = vmul.f32 %v290, %v346
        %v362 = vmul.f32 %v291, %v346
        %v363 = vmul.f32 %v292, %v346
        %v364 = vmul.f32 %v293, %v346
        %v365 = vmul.f32 %v294, %v346
        %v366 = vmul.f32 %v295, %v346
        %v367 = vmul.f32 %v296, %v346
        %v368 = vmul.f32 %v297, %v346
        %v369 = vmul.f32 %v298, %v346
        %v370 = vmul.f32 %v299, %v346
        %v371 = vmul.f32 %v300, %v346
        %v372 = vmul.f32 %v301, %v346
        %v373 = vmul.f32 %v302, %v346
        %v374 = vmul.f32 %v303, %v346
        %v375 = vmul.f32 %v304, %v346
        %v376 = vmul.f32 %v305, %v346
        %v377 = vmul.f32 %v306, %v346
        %v378 = vmul.f32 %v307, %v346
        %v379 = vmul.f32 %v308, %v346
        %v380 = vmul.f32 %v309, %v346
        %v381 = vmul.f32 %v310, %v346
        %v382 = vmul.f32 %v311, %v346
        %v383 = vmul.f32 %v312, %v346
        %v384 = vmul.f32 %v313, %v346
        %v385 = vmul.f32 %v314, %v346
        %v386 = vmul.f32 %v315, %v346
        %v387 = vmul.f32 %v316, %v346
        %v388 = vmul.f32 %v317, %v346
        %v389 = vmul.f32 %v318, %v346
        %v390 = vmul.f32 %v319, %v346
        %v391 = vmul.f32 %v320, %v346
        %v392 = vmul.f32 %v321, %v346
        %v393 = vmul.f32 %v322, %v346
        %v394 = vmul.f32 %v323, %v346
        %v395 = vmul.f32 %v324, %v346
        %v396 = vmul.f32 %v325, %v346
        %v397 = vmul.f32 %v326, %v346
        %v398 = vmul.f32 %v327, %v346
        %v399 = vmul.f32 %v328, %v346
        %v400 = vmul.f32 %v329, %v346
        %v401 = vmul.f32 %v330, %v346
        %v402 = vmul.f32 %v331, %v346
        %v403 = vmul.f32 %v332, %v346
        %v404 = vmul.f32 %v333, %v346
        %v405 = vmul.f32 %v334, %v346
        %v406 = vmul.f32 %v335, %v346
        %v407 = vmul.f32 %v336, %v346
        %v408 = vmul.f32 %v337, %v346
        %v409 = vmul.f32 %v338, %v346
        %v410 = vmul.f32 %v339, %v346
        %v411 = vmul.f32 %v340, %v346
        %v412 = vld [vmem:[%s2] sm:$0x1]
        %v414 = vlaneseq
        %v415 = vshrl.u32 %v414, 7
        %v416 = vsub.s32 0, %v415
        %v417 = vrot.slane %v412, %v416
        %v419 = vadd.f32 %v348, %v417
        %v420 = vadd.f32 %v349, %v417
        %v421 = vadd.f32 %v350, %v417
        %v422 = vadd.f32 %v351, %v417
        %v423 = vadd.f32 %v352, %v417
        %v424 = vadd.f32 %v353, %v417
        %v425 = vadd.f32 %v354, %v417
        %v426 = vadd.f32 %v355, %v417
        %v427 = vadd.f32 %v356, %v417
        %v428 = vadd.f32 %v357, %v417
        %v429 = vadd.f32 %v358, %v417
        %v430 = vadd.f32 %v359, %v417
        %v431 = vadd.f32 %v360, %v417
        %v432 = vadd.f32 %v361, %v417
        %v433 = vadd.f32 %v362, %v417
        %v434 = vadd.f32 %v363, %v417
        %v435 = vadd.f32 %v364, %v417
        %v436 = vadd.f32 %v365, %v417
        %v437 = vadd.f32 %v366, %v417
        %v438 = vadd.f32 %v367, %v417
        %v439 = vadd.f32 %v368, %v417
        %v440 = vadd.f32 %v369, %v417
        %v441 = vadd.f32 %v370, %v417
        %v442 = vadd.f32 %v371, %v417
        %v443 = vadd.f32 %v372, %v417
        %v444 = vadd.f32 %v373, %v417
        %v445 = vadd.f32 %v374, %v417
        %v446 = vadd.f32 %v375, %v417
        %v447 = vadd.f32 %v376, %v417
        %v448 = vadd.f32 %v377, %v417
        %v449 = vadd.f32 %v378, %v417
        %v450 = vadd.f32 %v379, %v417
        %v451 = vadd.f32 %v380, %v417
        %v452 = vadd.f32 %v381, %v417
        %v453 = vadd.f32 %v382, %v417
        %v454 = vadd.f32 %v383, %v417
        %v455 = vadd.f32 %v384, %v417
        %v456 = vadd.f32 %v385, %v417
        %v457 = vadd.f32 %v386, %v417
        %v458 = vadd.f32 %v387, %v417
        %v459 = vadd.f32 %v388, %v417
        %v460 = vadd.f32 %v389, %v417
        %v461 = vadd.f32 %v390, %v417
        %v462 = vadd.f32 %v391, %v417
        %v463 = vadd.f32 %v392, %v417
        %v464 = vadd.f32 %v393, %v417
        %v465 = vadd.f32 %v394, %v417
        %v466 = vadd.f32 %v395, %v417
        %v467 = vadd.f32 %v396, %v417
        %v468 = vadd.f32 %v397, %v417
        %v469 = vadd.f32 %v398, %v417
        %v470 = vadd.f32 %v399, %v417
        %v471 = vadd.f32 %v400, %v417
        %v472 = vadd.f32 %v401, %v417
        %v473 = vadd.f32 %v402, %v417
        %v474 = vadd.f32 %v403, %v417
        %v475 = vadd.f32 %v404, %v417
        %v476 = vadd.f32 %v405, %v417
        %v477 = vadd.f32 %v406, %v417
        %v478 = vadd.f32 %v407, %v417
        %v479 = vadd.f32 %v408, %v417
        %v480 = vadd.f32 %v409, %v417
        %v481 = vadd.f32 %v410, %v417
        %v482 = vadd.f32 %v411, %v417
        %v483 = vmax.f32 %v419, 0.0
        %v484 = vmax.f32 %v420, 0.0
        %v485 = vmax.f32 %v421, 0.0
        %v486 = vmax.f32 %v422, 0.0
        %v487 = vmax.f32 %v423, 0.0
        %v488 = vmax.f32 %v424, 0.0
        %v489 = vmax.f32 %v425, 0.0
        %v490 = vmax.f32 %v426, 0.0
        %v491 = vmax.f32 %v427, 0.0
        %v492 = vmax.f32 %v428, 0.0
        %v493 = vmax.f32 %v429, 0.0
        %v494 = vmax.f32 %v430, 0.0
        %v495 = vmax.f32 %v431, 0.0
        %v496 = vmax.f32 %v432, 0.0
        %v497 = vmax.f32 %v433, 0.0
        %v498 = vmax.f32 %v434, 0.0
        %v499 = vmax.f32 %v435, 0.0
        %v500 = vmax.f32 %v436, 0.0
        %v501 = vmax.f32 %v437, 0.0
        %v502 = vmax.f32 %v438, 0.0
        %v503 = vmax.f32 %v439, 0.0
        %v504 = vmax.f32 %v440, 0.0
        %v505 = vmax.f32 %v441, 0.0
        %v506 = vmax.f32 %v442, 0.0
        %v507 = vmax.f32 %v443, 0.0
        %v508 = vmax.f32 %v444, 0.0
        %v509 = vmax.f32 %v445, 0.0
        %v510 = vmax.f32 %v446, 0.0
        %v511 = vmax.f32 %v447, 0.0
        %v512 = vmax.f32 %v448, 0.0
        %v513 = vmax.f32 %v449, 0.0
        %v514 = vmax.f32 %v450, 0.0
        %v515 = vmax.f32 %v451, 0.0
        %v516 = vmax.f32 %v452, 0.0
        %v517 = vmax.f32 %v453, 0.0
        %v518 = vmax.f32 %v454, 0.0
        %v519 = vmax.f32 %v455, 0.0
        %v520 = vmax.f32 %v456, 0.0
        %v521 = vmax.f32 %v457, 0.0
        %v522 = vmax.f32 %v458, 0.0
        %v523 = vmax.f32 %v459, 0.0
        %v524 = vmax.f32 %v460, 0.0
        %v525 = vmax.f32 %v461, 0.0
        %v526 = vmax.f32 %v462, 0.0
        %v527 = vmax.f32 %v463, 0.0
        %v528 = vmax.f32 %v464, 0.0
        %v529 = vmax.f32 %v465, 0.0
        %v530 = vmax.f32 %v466, 0.0
        %v531 = vmax.f32 %v467, 0.0
        %v532 = vmax.f32 %v468, 0.0
        %v533 = vmax.f32 %v469, 0.0
        %v534 = vmax.f32 %v470, 0.0
        %v535 = vmax.f32 %v471, 0.0
        %v536 = vmax.f32 %v472, 0.0
        %v537 = vmax.f32 %v473, 0.0
        %v538 = vmax.f32 %v474, 0.0
        %v539 = vmax.f32 %v475, 0.0
        %v540 = vmax.f32 %v476, 0.0
        %v541 = vmax.f32 %v477, 0.0
        %v542 = vmax.f32 %v478, 0.0
        %v543 = vmax.f32 %v479, 0.0
        %v544 = vmax.f32 %v480, 0.0
        %v545 = vmax.f32 %v481, 0.0
        %v546 = vmax.f32 %v482, 0.0
        %v547 = vpack.c.bf16 %v484, %v483
        %v548 = vpack.c.bf16 %v486, %v485
        %v549 = vpack.c.bf16 %v488, %v487
        %v550 = vpack.c.bf16 %v490, %v489
        %v551 = vpack.c.bf16 %v492, %v491
        %v552 = vpack.c.bf16 %v494, %v493
        %v553 = vpack.c.bf16 %v496, %v495
        %v554 = vpack.c.bf16 %v498, %v497
        %v555 = vpack.c.bf16 %v500, %v499
        %v556 = vpack.c.bf16 %v502, %v501
        %v557 = vpack.c.bf16 %v504, %v503
        %v558 = vpack.c.bf16 %v506, %v505
        %v559 = vpack.c.bf16 %v508, %v507
        %v560 = vpack.c.bf16 %v510, %v509
        %v561 = vpack.c.bf16 %v512, %v511
        %v562 = vpack.c.bf16 %v514, %v513
        %v563 = vpack.c.bf16 %v516, %v515
        %v564 = vpack.c.bf16 %v518, %v517
        %v565 = vpack.c.bf16 %v520, %v519
        %v566 = vpack.c.bf16 %v522, %v521
        %v567 = vpack.c.bf16 %v524, %v523
        %v568 = vpack.c.bf16 %v526, %v525
        %v569 = vpack.c.bf16 %v528, %v527
        %v570 = vpack.c.bf16 %v530, %v529
        %v571 = vpack.c.bf16 %v532, %v531
        %v572 = vpack.c.bf16 %v534, %v533
        %v573 = vpack.c.bf16 %v536, %v535
        %v574 = vpack.c.bf16 %v538, %v537
        %v575 = vpack.c.bf16 %v540, %v539
        %v576 = vpack.c.bf16 %v542, %v541
        %v577 = vpack.c.bf16 %v544, %v543
        %v578 = vpack.c.bf16 %v546, %v545
        %v579 = vld [vmem:[%s3] sm:$0xf]
        %vm580 = vcmask 64512
        %v582 = vsel %vm580, %v547, 0
        %v585 = vsel %vm580, %v548, 0
        %v588 = vsel %vm580, %v549, 0
        %v591 = vsel %vm580, %v550, 0
        %v594 = vsel %vm580, %v551, 0
        %v597 = vsel %vm580, %v552, 0
        %v600 = vsel %vm580, %v553, 0
        %v603 = vsel %vm580, %v554, 0
        %v606 = vsel %vm580, %v555, 0
        %v609 = vsel %vm580, %v556, 0
        %v612 = vsel %vm580, %v557, 0
        %v615 = vsel %vm580, %v558, 0
        %v618 = vsel %vm580, %v559, 0
        %v621 = vsel %vm580, %v560, 0
        %v624 = vsel %vm580, %v561, 0
        %v627 = vsel %vm580, %v562, 0
        %v630 = vsel %vm580, %v563, 0
        %v633 = vsel %vm580, %v564, 0
        %v636 = vsel %vm580, %v565, 0
        %v639 = vsel %vm580, %v566, 0
        %v642 = vsel %vm580, %v567, 0
        %v645 = vsel %vm580, %v568, 0
        %v648 = vsel %vm580, %v569, 0
        %v651 = vsel %vm580, %v570, 0
        %v654 = vsel %vm580, %v571, 0
        %v657 = vsel %vm580, %v572, 0
        %v660 = vsel %vm580, %v573, 0
        %v663 = vsel %vm580, %v574, 0
        %v666 = vsel %vm580, %v575, 0
        %v669 = vsel %vm580, %v576, 0
        %v672 = vsel %vm580, %v577, 0
        %v675 = vsel %vm580, %v578, 0
        %vm677 = vcmask 1043456
        %v679 = vsel %vm677, %v579, 0
        %681 = vmatprep.subr.bf16.mxu0 0
        %682 = vmatpush1.bf16.msra.mxu0 %v679
        %683 = vmatprep.subr.bf16.mxu0 0
        %684 = vmatpush1.bf16.msra.mxu0 0
        %685 = vmatprep.subr.bf16.mxu0 0
        %686 = vmatpush1.bf16.msra.mxu0 0
        %687 = vmatprep.subr.bf16.mxu0 0
        %688 = vmatpush1.bf16.msra.mxu0 0
        %689 = vmatprep.subr.bf16.mxu0 0
        %690 = vmatpush1.bf16.msra.mxu0 0
        %691 = vmatprep.subr.bf16.mxu0 0
        %692 = vmatpush1.bf16.msra.mxu0 0
        %693 = vmatprep.subr.bf16.mxu0 0
        %694 = vmatpush1.bf16.msra.mxu0 0
        %695 = vmatprep.subr.bf16.mxu0 0
        %696 = vmatpush1.bf16.msra.mxu0 0
        %697 = vmatprep.subr.bf16.mxu0 0
        %698 = vmatpush1.bf16.msra.mxu0 0
        %699 = vmatprep.subr.bf16.mxu0 0
        %700 = vmatpush1.bf16.msra.mxu0 0
        %701 = vmatprep.subr.bf16.mxu0 0
        %702 = vmatpush1.bf16.msra.mxu0 0
        %703 = vmatprep.subr.bf16.mxu0 0
        %704 = vmatpush1.bf16.msra.mxu0 0
        %705 = vmatprep.subr.bf16.mxu0 0
        %706 = vmatpush1.bf16.msra.mxu0 0
        %707 = vmatprep.subr.bf16.mxu0 0
        %708 = vmatpush1.bf16.msra.mxu0 0
        %709 = vmatprep.subr.bf16.mxu0 0
        %710 = vmatpush1.bf16.msra.mxu0 0
        %711 = vmatprep.subr.bf16.mxu0 0
        %712 = vmatpush1.bf16.msra.mxu0 0
        %713 = vmatprep.mubr.bf16.mxu0 0
        %714 = vmatmul.mubr.bf16.gmra.mrb[0].mxu0 %v582
        %v715 = vpop.f32.mrb[0].mxu0
        %v716 = vadd.f32 0.0, %v715
        %v717 = vpop.f32.mrb[0].mxu0
        %v718 = vpop.f32.mrb[0].mxu0
        %v719 = vadd.f32 0.0, %v718
        %v720 = vpop.f32.mrb[0].mxu0
        %721 = vmatprep.mubr.bf16.mxu0 0
        %722 = vmatmul.mubr.bf16.gmra.mrb[0].mxu0 %v585
        %v723 = vpop.f32.mrb[0].mxu0
        %v724 = vadd.f32 0.0, %v723
        %v725 = vpop.f32.mrb[0].mxu0
        %v726 = vpop.f32.mrb[0].mxu0
        %v727 = vadd.f32 0.0, %v726
        %v728 = vpop.f32.mrb[0].mxu0
        %729 = vmatprep.mubr.bf16.mxu0 0
        %730 = vmatmul.mubr.bf16.gmra.mrb[0].mxu0 %v588
        %v731 = vpop.f32.mrb[0].mxu0
        %v732 = vadd.f32 0.0, %v731
        %v733 = vpop.f32.mrb[0].mxu0
        %v734 = vpop.f32.mrb[0].mxu0
        %v735 = vadd.f32 0.0, %v734
        %v736 = vpop.f32.mrb[0].mxu0
        %737 = vmatprep.mubr.bf16.mxu0 0
        %738 = vmatmul.mubr.bf16.gmra.mrb[0].mxu0 %v591
        %v739 = vpop.f32.mrb[0].mxu0
        %v740 = vadd.f32 0.0, %v739
        %v741 = vpop.f32.mrb[0].mxu0
        %v742 = vpop.f32.mrb[0].mxu0
        %v743 = vadd.f32 0.0, %v742
        %v744 = vpop.f32.mrb[0].mxu0
        %745 = vmatprep.mubr.bf16.mxu0 0
        %746 = vmatmul.mubr.bf16.gmra.mrb[0].mxu0 %v594
        %v747 = vpop.f32.mrb[0].mxu0
        %v748 = vadd.f32 0.0, %v747
        %v749 = vpop.f32.mrb[0].mxu0
        %v750 = vpop.f32.mrb[0].mxu0
        %v751 = vadd.f32 0.0, %v750
        %v752 = vpop.f32.mrb[0].mxu0
        %753 = vmatprep.mubr.bf16.mxu0 0
        %754 = vmatmul.mubr.bf16.gmra.mrb[0].mxu0 %v597
        %v755 = vpop.f32.mrb[0].mxu0
        %v756 = vadd.f32 0.0, %v755
        %v757 = vpop.f32.mrb[0].mxu0
        %v758 = vpop.f32.mrb[0].mxu0
        %v759 = vadd.f32 0.0, %v758
        %v760 = vpop.f32.mrb[0].mxu0
        %761 = vmatprep.mubr.bf16.mxu0 0
        %762 = vmatmul.mubr.bf16.gmra.mrb[0].mxu0 %v600
        %v763 = vpop.f32.mrb[0].mxu0
        %v764 = vadd.f32 0.0, %v763
        %v765 = vpop.f32.mrb[0].mxu0
        %v766 = vpop.f32.mrb[0].mxu0
        %v767 = vadd.f32 0.0, %v766
        %v768 = vpop.f32.mrb[0].mxu0
        %769 = vmatprep.mubr.bf16.mxu0 0
        %770 = vmatmul.mubr.bf16.gmra.mrb[0].mxu0 %v603
        %v771 = vpop.f32.mrb[0].mxu0
        %v772 = vadd.f32 0.0, %v771
        %v773 = vpop.f32.mrb[0].mxu0
        %v774 = vpop.f32.mrb[0].mxu0
        %v775 = vadd.f32 0.0, %v774
        %v776 = vpop.f32.mrb[0].mxu0
        %777 = vmatprep.mubr.bf16.mxu0 0
        %778 = vmatmul.mubr.bf16.gmra.mrb[0].mxu0 %v606
        %v779 = vpop.f32.mrb[0].mxu0
        %v780 = vadd.f32 0.0, %v779
        %v781 = vpop.f32.mrb[0].mxu0
        %v782 = vpop.f32.mrb[0].mxu0
        %v783 = vadd.f32 0.0, %v782
        %v784 = vpop.f32.mrb[0].mxu0
        %785 = vmatprep.mubr.bf16.mxu0 0
        %786 = vmatmul.mubr.bf16.gmra.mrb[0].mxu0 %v609
        %v787 = vpop.f32.mrb[0].mxu0
        %v788 = vadd.f32 0.0, %v787
        %v789 = vpop.f32.mrb[0].mxu0
        %v790 = vpop.f32.mrb[0].mxu0
        %v791 = vadd.f32 0.0, %v790
        %v792 = vpop.f32.mrb[0].mxu0
        %793 = vmatprep.mubr.bf16.mxu0 0
        %794 = vmatmul.mubr.bf16.gmra.mrb[0].mxu0 %v612
        %v795 = vpop.f32.mrb[0].mxu0
        %v796 = vadd.f32 0.0, %v795
        %v797 = vpop.f32.mrb[0].mxu0
        %v798 = vpop.f32.mrb[0].mxu0
        %v799 = vadd.f32 0.0, %v798
        %v800 = vpop.f32.mrb[0].mxu0
        %801 = vmatprep.mubr.bf16.mxu0 0
        %802 = vmatmul.mubr.bf16.gmra.mrb[0].mxu0 %v615
        %v803 = vpop.f32.mrb[0].mxu0
        %v804 = vadd.f32 0.0, %v803
        %v805 = vpop.f32.mrb[0].mxu0
        %v806 = vpop.f32.mrb[0].mxu0
        %v807 = vadd.f32 0.0, %v806
        %v808 = vpop.f32.mrb[0].mxu0
        %809 = vmatprep.mubr.bf16.mxu0 0
        %810 = vmatmul.mubr.bf16.gmra.mrb[0].mxu0 %v618
        %v811 = vpop.f32.mrb[0].mxu0
        %v812 = vadd.f32 0.0, %v811
        %v813 = vpop.f32.mrb[0].mxu0
        %v814 = vpop.f32.mrb[0].mxu0
        %v815 = vadd.f32 0.0, %v814
        %v816 = vpop.f32.mrb[0].mxu0
        %817 = vmatprep.mubr.bf16.mxu0 0
        %818 = vmatmul.mubr.bf16.gmra.mrb[0].mxu0 %v621
        %v819 = vpop.f32.mrb[0].mxu0
        %v820 = vadd.f32 0.0, %v819
        %v821 = vpop.f32.mrb[0].mxu0
        %v822 = vpop.f32.mrb[0].mxu0
        %v823 = vadd.f32 0.0, %v822
        %v824 = vpop.f32.mrb[0].mxu0
        %825 = vmatprep.mubr.bf16.mxu0 0
        %826 = vmatmul.mubr.bf16.gmra.mrb[0].mxu0 %v624
        %v827 = vpop.f32.mrb[0].mxu0
        %v828 = vadd.f32 0.0, %v827
        %v829 = vpop.f32.mrb[0].mxu0
        %v830 = vpop.f32.mrb[0].mxu0
        %v831 = vadd.f32 0.0, %v830
        %v832 = vpop.f32.mrb[0].mxu0
        %833 = vmatprep.mubr.bf16.mxu0 0
        %834 = vmatmul.mubr.bf16.gmra.mrb[0].mxu0 %v627
        %v835 = vpop.f32.mrb[0].mxu0
        %v836 = vadd.f32 0.0, %v835
        %v837 = vpop.f32.mrb[0].mxu0
        %v838 = vpop.f32.mrb[0].mxu0
        %v839 = vadd.f32 0.0, %v838
        %v840 = vpop.f32.mrb[0].mxu0
        %841 = vmatprep.mubr.bf16.mxu0 0
        %842 = vmatmul.mubr.bf16.gmra.mrb[0].mxu0 %v630
        %v843 = vpop.f32.mrb[0].mxu0
        %v844 = vadd.f32 0.0, %v843
        %v845 = vpop.f32.mrb[0].mxu0
        %v846 = vpop.f32.mrb[0].mxu0
        %v847 = vadd.f32 0.0, %v846
        %v848 = vpop.f32.mrb[0].mxu0
        %849 = vmatprep.mubr.bf16.mxu0 0
        %850 = vmatmul.mubr.bf16.gmra.mrb[0].mxu0 %v633
        %v851 = vpop.f32.mrb[0].mxu0
        %v852 = vadd.f32 0.0, %v851
        %v853 = vpop.f32.mrb[0].mxu0
        %v854 = vpop.f32.mrb[0].mxu0
        %v855 = vadd.f32 0.0, %v854
        %v856 = vpop.f32.mrb[0].mxu0
        %857 = vmatprep.mubr.bf16.mxu0 0
        %858 = vmatmul.mubr.bf16.gmra.mrb[0].mxu0 %v636
        %v859 = vpop.f32.mrb[0].mxu0
        %v860 = vadd.f32 0.0, %v859
        %v861 = vpop.f32.mrb[0].mxu0
        %v862 = vpop.f32.mrb[0].mxu0
        %v863 = vadd.f32 0.0, %v862
        %v864 = vpop.f32.mrb[0].mxu0
        %865 = vmatprep.mubr.bf16.mxu0 0
        %866 = vmatmul.mubr.bf16.gmra.mrb[0].mxu0 %v639
        %v867 = vpop.f32.mrb[0].mxu0
        %v868 = vadd.f32 0.0, %v867
        %v869 = vpop.f32.mrb[0].mxu0
        %v870 = vpop.f32.mrb[0].mxu0
        %v871 = vadd.f32 0.0, %v870
        %v872 = vpop.f32.mrb[0].mxu0
        %873 = vmatprep.mubr.bf16.mxu0 0
        %874 = vmatmul.mubr.bf16.gmra.mrb[0].mxu0 %v642
        %v875 = vpop.f32.mrb[0].mxu0
        %v876 = vadd.f32 0.0, %v875
        %v877 = vpop.f32.mrb[0].mxu0
        %v878 = vpop.f32.mrb[0].mxu0
        %v879 = vadd.f32 0.0, %v878
        %v880 = vpop.f32.mrb[0].mxu0
        %881 = vmatprep.mubr.bf16.mxu0 0
        %882 = vmatmul.mubr.bf16.gmra.mrb[0].mxu0 %v645
        %v883 = vpop.f32.mrb[0].mxu0
        %v884 = vadd.f32 0.0, %v883
        %v885 = vpop.f32.mrb[0].mxu0
        %v886 = vpop.f32.mrb[0].mxu0
        %v887 = vadd.f32 0.0, %v886
        %v888 = vpop.f32.mrb[0].mxu0
        %889 = vmatprep.mubr.bf16.mxu0 0
        %890 = vmatmul.mubr.bf16.gmra.mrb[0].mxu0 %v648
        %v891 = vpop.f32.mrb[0].mxu0
        %v892 = vadd.f32 0.0, %v891
        %v893 = vpop.f32.mrb[0].mxu0
        %v894 = vpop.f32.mrb[0].mxu0
        %v895 = vadd.f32 0.0, %v894
        %v896 = vpop.f32.mrb[0].mxu0
        %897 = vmatprep.mubr.bf16.mxu0 0
        %898 = vmatmul.mubr.bf16.gmra.mrb[0].mxu0 %v651
        %v899 = vpop.f32.mrb[0].mxu0
        %v900 = vadd.f32 0.0, %v899
        %v901 = vpop.f32.mrb[0].mxu0
        %v902 = vpop.f32.mrb[0].mxu0
        %v903 = vadd.f32 0.0, %v902
        %v904 = vpop.f32.mrb[0].mxu0
        %905 = vmatprep.mubr.bf16.mxu0 0
        %906 = vmatmul.mubr.bf16.gmra.mrb[0].mxu0 %v654
        %v907 = vpop.f32.mrb[0].mxu0
        %v908 = vadd.f32 0.0, %v907
        %v909 = vpop.f32.mrb[0].mxu0
        %v910 = vpop.f32.mrb[0].mxu0
        %v911 = vadd.f32 0.0, %v910
        %v912 = vpop.f32.mrb[0].mxu0
        %913 = vmatprep.mubr.bf16.mxu0 0
        %914 = vmatmul.mubr.bf16.gmra.mrb[0].mxu0 %v657
        %v915 = vpop.f32.mrb[0].mxu0
        %v916 = vadd.f32 0.0, %v915
        %v917 = vpop.f32.mrb[0].mxu0
        %v918 = vpop.f32.mrb[0].mxu0
        %v919 = vadd.f32 0.0, %v918
        %v920 = vpop.f32.mrb[0].mxu0
        %921 = vmatprep.mubr.bf16.mxu0 0
        %922 = vmatmul.mubr.bf16.gmra.mrb[0].mxu0 %v660
        %v923 = vpop.f32.mrb[0].mxu0
        %v924 = vadd.f32 0.0, %v923
        %v925 = vpop.f32.mrb[0].mxu0
        %v926 = vpop.f32.mrb[0].mxu0
        %v927 = vadd.f32 0.0, %v926
        %v928 = vpop.f32.mrb[0].mxu0
        %929 = vmatprep.mubr.bf16.mxu0 0
        %930 = vmatmul.mubr.bf16.gmra.mrb[0].mxu0 %v663
        %v931 = vpop.f32.mrb[0].mxu0
        %v932 = vadd.f32 0.0, %v931
        %v933 = vpop.f32.mrb[0].mxu0
        %v934 = vpop.f32.mrb[0].mxu0
        %v935 = vadd.f32 0.0, %v934
        %v936 = vpop.f32.mrb[0].mxu0
        %937 = vmatprep.mubr.bf16.mxu0 0
        %938 = vmatmul.mubr.bf16.gmra.mrb[0].mxu0 %v666
        %v939 = vpop.f32.mrb[0].mxu0
        %v940 = vadd.f32 0.0, %v939
        %v941 = vpop.f32.mrb[0].mxu0
        %v942 = vpop.f32.mrb[0].mxu0
        %v943 = vadd.f32 0.0, %v942
        %v944 = vpop.f32.mrb[0].mxu0
        %945 = vmatprep.mubr.bf16.mxu0 0
        %946 = vmatmul.mubr.bf16.gmra.mrb[0].mxu0 %v669
        %v947 = vpop.f32.mrb[0].mxu0
        %v948 = vadd.f32 0.0, %v947
        %v949 = vpop.f32.mrb[0].mxu0
        %v950 = vpop.f32.mrb[0].mxu0
        %v951 = vadd.f32 0.0, %v950
        %v952 = vpop.f32.mrb[0].mxu0
        %953 = vmatprep.mubr.bf16.mxu0 0
        %954 = vmatmul.mubr.bf16.gmra.mrb[0].mxu0 %v672
        %v955 = vpop.f32.mrb[0].mxu0
        %v956 = vadd.f32 0.0, %v955
        %v957 = vpop.f32.mrb[0].mxu0
        %v958 = vpop.f32.mrb[0].mxu0
        %v959 = vadd.f32 0.0, %v958
        %v960 = vpop.f32.mrb[0].mxu0
        %961 = vmatprep.mubr.bf16.mxu0 0
        %962 = vmatmul.mubr.bf16.gmra.mrb[0].mxu0 %v675
        %v963 = vpop.f32.mrb[0].mxu0
        %v964 = vadd.f32 0.0, %v963
        %v965 = vpop.f32.mrb[0].mxu0
        %v966 = vpop.f32.mrb[0].mxu0
        %v967 = vadd.f32 0.0, %v966
        %v968 = vpop.f32.mrb[0].mxu0
        %969 = vdwg.mxu0
        %v970 = vpack.c.bf16 %v719, %v716
        %v971 = vpack.c.bf16 %v727, %v724
        %v972 = vpack.c.bf16 %v735, %v732
        %v973 = vpack.c.bf16 %v743, %v740
        %v974 = vpack.c.bf16 %v751, %v748
        %v975 = vpack.c.bf16 %v759, %v756
        %v976 = vpack.c.bf16 %v767, %v764
        %v977 = vpack.c.bf16 %v775, %v772
        %v978 = vpack.c.bf16 %v783, %v780
        %v979 = vpack.c.bf16 %v791, %v788
        %v980 = vpack.c.bf16 %v799, %v796
        %v981 = vpack.c.bf16 %v807, %v804
        %v982 = vpack.c.bf16 %v815, %v812
        %v983 = vpack.c.bf16 %v823, %v820
        %v984 = vpack.c.bf16 %v831, %v828
        %v985 = vpack.c.bf16 %v839, %v836
        %v986 = vpack.c.bf16 %v847, %v844
        %v987 = vpack.c.bf16 %v855, %v852
        %v988 = vpack.c.bf16 %v863, %v860
        %v989 = vpack.c.bf16 %v871, %v868
        %v990 = vpack.c.bf16 %v879, %v876
        %v991 = vpack.c.bf16 %v887, %v884
        %v992 = vpack.c.bf16 %v895, %v892
        %v993 = vpack.c.bf16 %v903, %v900
        %v994 = vpack.c.bf16 %v911, %v908
        %v995 = vpack.c.bf16 %v919, %v916
        %v996 = vpack.c.bf16 %v927, %v924
        %v997 = vpack.c.bf16 %v935, %v932
        %v998 = vpack.c.bf16 %v943, %v940
        %v999 = vpack.c.bf16 %v951, %v948
        %v1000 = vpack.c.bf16 %v959, %v956
        %v1001 = vpack.c.bf16 %v967, %v964
        %v1034 = vunpack.c.l.b16 %v970
        %v1035 = vunpack.c.h.b16 %v970
        %v1036 = vunpack.c.l.b16 %v971
        %v1037 = vunpack.c.h.b16 %v971
        %v1038 = vunpack.c.l.b16 %v972
        %v1039 = vunpack.c.h.b16 %v972
        %v1040 = vunpack.c.l.b16 %v973
        %v1041 = vunpack.c.h.b16 %v973
        %v1042 = vunpack.c.l.b16 %v974
        %v1043 = vunpack.c.h.b16 %v974
        %v1044 = vunpack.c.l.b16 %v975
        %v1045 = vunpack.c.h.b16 %v975
        %v1046 = vunpack.c.l.b16 %v976
        %v1047 = vunpack.c.h.b16 %v976
        %v1048 = vunpack.c.l.b16 %v977
        %v1049 = vunpack.c.h.b16 %v977
        %v1050 = vunpack.c.l.b16 %v978
        %v1051 = vunpack.c.h.b16 %v978
        %v1052 = vunpack.c.l.b16 %v979
        %v1053 = vunpack.c.h.b16 %v979
        %v1054 = vunpack.c.l.b16 %v980
        %v1055 = vunpack.c.h.b16 %v980
        %v1056 = vunpack.c.l.b16 %v981
        %v1057 = vunpack.c.h.b16 %v981
        %v1058 = vunpack.c.l.b16 %v982
        %v1059 = vunpack.c.h.b16 %v982
        %v1060 = vunpack.c.l.b16 %v983
        %v1061 = vunpack.c.h.b16 %v983
        %v1062 = vunpack.c.l.b16 %v984
        %v1063 = vunpack.c.h.b16 %v984
        %v1064 = vunpack.c.l.b16 %v985
        %v1065 = vunpack.c.h.b16 %v985
        %v1066 = vunpack.c.l.b16 %v986
        %v1067 = vunpack.c.h.b16 %v986
        %v1068 = vunpack.c.l.b16 %v987
        %v1069 = vunpack.c.h.b16 %v987
        %v1070 = vunpack.c.l.b16 %v988
        %v1071 = vunpack.c.h.b16 %v988
        %v1072 = vunpack.c.l.b16 %v989
        %v1073 = vunpack.c.h.b16 %v989
        %v1074 = vunpack.c.l.b16 %v990
        %v1075 = vunpack.c.h.b16 %v990
        %v1076 = vunpack.c.l.b16 %v991
        %v1077 = vunpack.c.h.b16 %v991
        %v1078 = vunpack.c.l.b16 %v992
        %v1079 = vunpack.c.h.b16 %v992
        %v1080 = vunpack.c.l.b16 %v993
        %v1081 = vunpack.c.h.b16 %v993
        %v1082 = vunpack.c.l.b16 %v994
        %v1083 = vunpack.c.h.b16 %v994
        %v1084 = vunpack.c.l.b16 %v995
        %v1085 = vunpack.c.h.b16 %v995
        %v1086 = vunpack.c.l.b16 %v996
        %v1087 = vunpack.c.h.b16 %v996
        %v1088 = vunpack.c.l.b16 %v997
        %v1089 = vunpack.c.h.b16 %v997
        %v1090 = vunpack.c.l.b16 %v998
        %v1091 = vunpack.c.h.b16 %v998
        %v1092 = vunpack.c.l.b16 %v999
        %v1093 = vunpack.c.h.b16 %v999
        %v1094 = vunpack.c.l.b16 %v1000
        %v1095 = vunpack.c.h.b16 %v1000
        %v1096 = vunpack.c.l.b16 %v1001
        %v1097 = vunpack.c.h.b16 %v1001
        %v1098 = vpack.c.b16 %v1034, %v1034
        %v1099 = vpack.c.b16 %v1035, %v1035
        %v1100 = vpack.c.b16 %v1036, %v1036
        %v1101 = vpack.c.b16 %v1037, %v1037
        %v1102 = vpack.c.b16 %v1038, %v1038
        %v1103 = vpack.c.b16 %v1039, %v1039
        %v1104 = vpack.c.b16 %v1040, %v1040
        %v1105 = vpack.c.b16 %v1041, %v1041
        %v1106 = vpack.c.b16 %v1042, %v1042
        %v1107 = vpack.c.b16 %v1043, %v1043
        %v1108 = vpack.c.b16 %v1044, %v1044
        %v1109 = vpack.c.b16 %v1045, %v1045
        %v1110 = vpack.c.b16 %v1046, %v1046
        %v1111 = vpack.c.b16 %v1047, %v1047
        %v1112 = vpack.c.b16 %v1048, %v1048
        %v1113 = vpack.c.b16 %v1049, %v1049
        %v1114 = vpack.c.b16 %v1050, %v1050
        %v1115 = vpack.c.b16 %v1051, %v1051
        %v1116 = vpack.c.b16 %v1052, %v1052
        %v1117 = vpack.c.b16 %v1053, %v1053
        %v1118 = vpack.c.b16 %v1054, %v1054
        %v1119 = vpack.c.b16 %v1055, %v1055
        %v1120 = vpack.c.b16 %v1056, %v1056
        %v1121 = vpack.c.b16 %v1057, %v1057
        %v1122 = vpack.c.b16 %v1058, %v1058
        %v1123 = vpack.c.b16 %v1059, %v1059
        %v1124 = vpack.c.b16 %v1060, %v1060
        %v1125 = vpack.c.b16 %v1061, %v1061
        %v1126 = vpack.c.b16 %v1062, %v1062
        %v1127 = vpack.c.b16 %v1063, %v1063
        %v1128 = vpack.c.b16 %v1064, %v1064
        %v1129 = vpack.c.b16 %v1065, %v1065
        %v1130 = vpack.c.b16 %v1066, %v1066
        %v1131 = vpack.c.b16 %v1067, %v1067
        %v1132 = vpack.c.b16 %v1068, %v1068
        %v1133 = vpack.c.b16 %v1069, %v1069
        %v1134 = vpack.c.b16 %v1070, %v1070
        %v1135 = vpack.c.b16 %v1071, %v1071
        %v1136 = vpack.c.b16 %v1072, %v1072
        %v1137 = vpack.c.b16 %v1073, %v1073
        %v1138 = vpack.c.b16 %v1074, %v1074
        %v1139 = vpack.c.b16 %v1075, %v1075
        %v1140 = vpack.c.b16 %v1076, %v1076
        %v1141 = vpack.c.b16 %v1077, %v1077
        %v1142 = vpack.c.b16 %v1078, %v1078
        %v1143 = vpack.c.b16 %v1079, %v1079
        %v1144 = vpack.c.b16 %v1080, %v1080
        %v1145 = vpack.c.b16 %v1081, %v1081
        %v1146 = vpack.c.b16 %v1082, %v1082
        %v1147 = vpack.c.b16 %v1083, %v1083
        %v1148 = vpack.c.b16 %v1084, %v1084
        %v1149 = vpack.c.b16 %v1085, %v1085
        %v1150 = vpack.c.b16 %v1086, %v1086
        %v1151 = vpack.c.b16 %v1087, %v1087
        %v1152 = vpack.c.b16 %v1088, %v1088
        %v1153 = vpack.c.b16 %v1089, %v1089
        %v1154 = vpack.c.b16 %v1090, %v1090
        %v1155 = vpack.c.b16 %v1091, %v1091
        %v1156 = vpack.c.b16 %v1092, %v1092
        %v1157 = vpack.c.b16 %v1093, %v1093
        %v1158 = vpack.c.b16 %v1094, %v1094
        %v1159 = vpack.c.b16 %v1095, %v1095
        %v1160 = vpack.c.b16 %v1096, %v1096
        %v1161 = vpack.c.b16 %v1097, %v1097
        %vm1226 = vcmask 125952
        %1227 = vst.msk [vmem:[%s274] sm:$0xf] %vm1226, %v1098
        %1228 = vst.msk [vmem:[%s274 + $0x4] sm:$0xf] %vm1226, %v1099
        %1229 = vst.msk [vmem:[%s274 + $0x8] sm:$0xf] %vm1226, %v1100
        %1230 = vst.msk [vmem:[%s274 + $0xc] sm:$0xf] %vm1226, %v1101
        %1231 = vst.msk [vmem:[%s274 + $0x10] sm:$0xf] %vm1226, %v1102
        %1232 = vst.msk [vmem:[%s274 + $0x14] sm:$0xf] %vm1226, %v1103
        %1233 = vst.msk [vmem:[%s274 + $0x18] sm:$0xf] %vm1226, %v1104
        %1234 = vst.msk [vmem:[%s274 + $0x1c] sm:$0xf] %vm1226, %v1105
        %1235 = vst.msk [vmem:[%s274 + $0x20] sm:$0xf] %vm1226, %v1106
        %1236 = vst.msk [vmem:[%s274 + $0x24] sm:$0xf] %vm1226, %v1107
        %1237 = vst.msk [vmem:[%s274 + $0x28] sm:$0xf] %vm1226, %v1108
        %1238 = vst.msk [vmem:[%s274 + $0x2c] sm:$0xf] %vm1226, %v1109
        %1239 = vst.msk [vmem:[%s274 + $0x30] sm:$0xf] %vm1226, %v1110
        %1240 = vst.msk [vmem:[%s274 + $0x34] sm:$0xf] %vm1226, %v1111
        %1241 = vst.msk [vmem:[%s274 + $0x38] sm:$0xf] %vm1226, %v1112
        %1242 = vst.msk [vmem:[%s274 + $0x3c] sm:$0xf] %vm1226, %v1113
        %1243 = vst.msk [vmem:[%s274 + $0x40] sm:$0xf] %vm1226, %v1114
        %1244 = vst.msk [vmem:[%s274 + $0x44] sm:$0xf] %vm1226, %v1115
        %1245 = vst.msk [vmem:[%s274 + $0x48] sm:$0xf] %vm1226, %v1116
        %1246 = vst.msk [vmem:[%s274 + $0x4c] sm:$0xf] %vm1226, %v1117
        %1247 = vst.msk [vmem:[%s274 + $0x50] sm:$0xf] %vm1226, %v1118
        %1248 = vst.msk [vmem:[%s274 + $0x54] sm:$0xf] %vm1226, %v1119
        %1249 = vst.msk [vmem:[%s274 + $0x58] sm:$0xf] %vm1226, %v1120
        %1250 = vst.msk [vmem:[%s274 + $0x5c] sm:$0xf] %vm1226, %v1121
        %1251 = vst.msk [vmem:[%s274 + $0x60] sm:$0xf] %vm1226, %v1122
        %1252 = vst.msk [vmem:[%s274 + $0x64] sm:$0xf] %vm1226, %v1123
        %1253 = vst.msk [vmem:[%s274 + $0x68] sm:$0xf] %vm1226, %v1124
        %1254 = vst.msk [vmem:[%s274 + $0x6c] sm:$0xf] %vm1226, %v1125
        %1255 = vst.msk [vmem:[%s274 + $0x70] sm:$0xf] %vm1226, %v1126
        %1256 = vst.msk [vmem:[%s274 + $0x74] sm:$0xf] %vm1226, %v1127
        %1257 = vst.msk [vmem:[%s274 + $0x78] sm:$0xf] %vm1226, %v1128
        %1258 = vst.msk [vmem:[%s274 + $0x7c] sm:$0xf] %vm1226, %v1129
        %1259 = vst.msk [vmem:[%s274 + $0x80] sm:$0xf] %vm1226, %v1130
        %1260 = vst.msk [vmem:[%s274 + $0x84] sm:$0xf] %vm1226, %v1131
        %1261 = vst.msk [vmem:[%s274 + $0x88] sm:$0xf] %vm1226, %v1132
        %1262 = vst.msk [vmem:[%s274 + $0x8c] sm:$0xf] %vm1226, %v1133
        %1263 = vst.msk [vmem:[%s274 + $0x90] sm:$0xf] %vm1226, %v1134
        %1264 = vst.msk [vmem:[%s274 + $0x94] sm:$0xf] %vm1226, %v1135
        %1265 = vst.msk [vmem:[%s274 + $0x98] sm:$0xf] %vm1226, %v1136
        %1266 = vst.msk [vmem:[%s274 + $0x9c] sm:$0xf] %vm1226, %v1137
        %1267 = vst.msk [vmem:[%s274 + $0xa0] sm:$0xf] %vm1226, %v1138
        %1268 = vst.msk [vmem:[%s274 + $0xa4] sm:$0xf] %vm1226, %v1139
        %1269 = vst.msk [vmem:[%s274 + $0xa8] sm:$0xf] %vm1226, %v1140
        %1270 = vst.msk [vmem:[%s274 + $0xac] sm:$0xf] %vm1226, %v1141
        %1271 = vst.msk [vmem:[%s274 + $0xb0] sm:$0xf] %vm1226, %v1142
        %1272 = vst.msk [vmem:[%s274 + $0xb4] sm:$0xf] %vm1226, %v1143
        %1273 = vst.msk [vmem:[%s274 + $0xb8] sm:$0xf] %vm1226, %v1144
        %1274 = vst.msk [vmem:[%s274 + $0xbc] sm:$0xf] %vm1226, %v1145
        %1275 = vst.msk [vmem:[%s274 + $0xc0] sm:$0xf] %vm1226, %v1146
        %1276 = vst.msk [vmem:[%s274 + $0xc4] sm:$0xf] %vm1226, %v1147
        %1277 = vst.msk [vmem:[%s274 + $0xc8] sm:$0xf] %vm1226, %v1148
        %1278 = vst.msk [vmem:[%s274 + $0xcc] sm:$0xf] %vm1226, %v1149
        %1279 = vst.msk [vmem:[%s274 + $0xd0] sm:$0xf] %vm1226, %v1150
        %1280 = vst.msk [vmem:[%s274 + $0xd4] sm:$0xf] %vm1226, %v1151
        %1281 = vst.msk [vmem:[%s274 + $0xd8] sm:$0xf] %vm1226, %v1152
        %1282 = vst.msk [vmem:[%s274 + $0xdc] sm:$0xf] %vm1226, %v1153
        %1283 = vst.msk [vmem:[%s274 + $0xe0] sm:$0xf] %vm1226, %v1154
        %1284 = vst.msk [vmem:[%s274 + $0xe4] sm:$0xf] %vm1226, %v1155
        %1285 = vst.msk [vmem:[%s274 + $0xe8] sm:$0xf] %vm1226, %v1156
        %1286 = vst.msk [vmem:[%s274 + $0xec] sm:$0xf] %vm1226, %v1157
        %1287 = vst.msk [vmem:[%s274 + $0xf0] sm:$0xf] %vm1226, %v1158
        %1288 = vst.msk [vmem:[%s274 + $0xf4] sm:$0xf] %vm1226, %v1159
        %1289 = vst.msk [vmem:[%s274 + $0xf8] sm:$0xf] %vm1226, %v1160
        %1290 = vst.msk [vmem:[%s274 + $0xfc] sm:$0xf] %vm1226, %v1161
        %vm1291 = vcmask 130048
        %v1292 = vsel %vm1291, %v716, 0.0
        %v1293 = vsel %vm1291, %v719, 0.0
        %v1294 = vadd.f32 %v1292, %v1293
        %v1295 = vsel %vm1291, %v724, 0.0
        %v1296 = vadd.f32 %v1294, %v1295
        %v1297 = vsel %vm1291, %v727, 0.0
        %v1298 = vadd.f32 %v1296, %v1297
        %v1299 = vsel %vm1291, %v732, 0.0
        %v1300 = vadd.f32 %v1298, %v1299
        %v1301 = vsel %vm1291, %v735, 0.0
        %v1302 = vadd.f32 %v1300, %v1301
        %v1303 = vsel %vm1291, %v740, 0.0
        %v1304 = vadd.f32 %v1302, %v1303
        %v1305 = vsel %vm1291, %v743, 0.0
        %v1306 = vadd.f32 %v1304, %v1305
        %v1307 = vsel %vm1291, %v748, 0.0
        %v1308 = vadd.f32 %v1306, %v1307
        %v1309 = vsel %vm1291, %v751, 0.0
        %v1310 = vadd.f32 %v1308, %v1309
        %v1311 = vsel %vm1291, %v756, 0.0
        %v1312 = vadd.f32 %v1310, %v1311
        %v1313 = vsel %vm1291, %v759, 0.0
        %v1314 = vadd.f32 %v1312, %v1313
        %v1315 = vsel %vm1291, %v764, 0.0
        %v1316 = vadd.f32 %v1314, %v1315
        %v1317 = vsel %vm1291, %v767, 0.0
        %v1318 = vadd.f32 %v1316, %v1317
        %v1319 = vsel %vm1291, %v772, 0.0
        %v1320 = vadd.f32 %v1318, %v1319
        %v1321 = vsel %vm1291, %v775, 0.0
        %v1322 = vadd.f32 %v1320, %v1321
        %v1323 = vsel %vm1291, %v780, 0.0
        %v1324 = vadd.f32 %v1322, %v1323
        %v1325 = vsel %vm1291, %v783, 0.0
        %v1326 = vadd.f32 %v1324, %v1325
        %v1327 = vsel %vm1291, %v788, 0.0
        %v1328 = vadd.f32 %v1326, %v1327
        %v1329 = vsel %vm1291, %v791, 0.0
        %v1330 = vadd.f32 %v1328, %v1329
        %v1331 = vsel %vm1291, %v796, 0.0
        %v1332 = vadd.f32 %v1330, %v1331
        %v1333 = vsel %vm1291, %v799, 0.0
        %v1334 = vadd.f32 %v1332, %v1333
        %v1335 = vsel %vm1291, %v804, 0.0
        %v1336 = vadd.f32 %v1334, %v1335
        %v1337 = vsel %vm1291, %v807, 0.0
        %v1338 = vadd.f32 %v1336, %v1337
        %v1339 = vsel %vm1291, %v812, 0.0
        %v1340 = vadd.f32 %v1338, %v1339
        %v1341 = vsel %vm1291, %v815, 0.0
        %v1342 = vadd.f32 %v1340, %v1341
        %v1343 = vsel %vm1291, %v820, 0.0
        %v1344 = vadd.f32 %v1342, %v1343
        %v1345 = vsel %vm1291, %v823, 0.0
        %v1346 = vadd.f32 %v1344, %v1345
        %v1347 = vsel %vm1291, %v828, 0.0
        %v1348 = vadd.f32 %v1346, %v1347
        %v1349 = vsel %vm1291, %v831, 0.0
        %v1350 = vadd.f32 %v1348, %v1349
        %v1351 = vsel %vm1291, %v836, 0.0
        %v1352 = vadd.f32 %v1350, %v1351
        %v1353 = vsel %vm1291, %v839, 0.0
        %v1354 = vadd.f32 %v1352, %v1353
        %v1355 = vsel %vm1291, %v844, 0.0
        %v1356 = vadd.f32 %v1354, %v1355
        %v1357 = vsel %vm1291, %v847, 0.0
        %v1358 = vadd.f32 %v1356, %v1357
        %v1359 = vsel %vm1291, %v852, 0.0
        %v1360 = vadd.f32 %v1358, %v1359
        %v1361 = vsel %vm1291, %v855, 0.0
        %v1362 = vadd.f32 %v1360, %v1361
        %v1363 = vsel %vm1291, %v860, 0.0
        %v1364 = vadd.f32 %v1362, %v1363
        %v1365 = vsel %vm1291, %v863, 0.0
        %v1366 = vadd.f32 %v1364, %v1365
        %v1367 = vsel %vm1291, %v868, 0.0
        %v1368 = vadd.f32 %v1366, %v1367
        %v1369 = vsel %vm1291, %v871, 0.0
        %v1370 = vadd.f32 %v1368, %v1369
        %v1371 = vsel %vm1291, %v876, 0.0
        %v1372 = vadd.f32 %v1370, %v1371
        %v1373 = vsel %vm1291, %v879, 0.0
        %v1374 = vadd.f32 %v1372, %v1373
        %v1375 = vsel %vm1291, %v884, 0.0
        %v1376 = vadd.f32 %v1374, %v1375
        %v1377 = vsel %vm1291, %v887, 0.0
        %v1378 = vadd.f32 %v1376, %v1377
        %v1379 = vsel %vm1291, %v892, 0.0
        %v1380 = vadd.f32 %v1378, %v1379
        %v1381 = vsel %vm1291, %v895, 0.0
        %v1382 = vadd.f32 %v1380, %v1381
        %v1383 = vsel %vm1291, %v900, 0.0
        %v1384 = vadd.f32 %v1382, %v1383
        %v1385 = vsel %vm1291, %v903, 0.0
        %v1386 = vadd.f32 %v1384, %v1385
        %v1387 = vsel %vm1291, %v908, 0.0
        %v1388 = vadd.f32 %v1386, %v1387
        %v1389 = vsel %vm1291, %v911, 0.0
        %v1390 = vadd.f32 %v1388, %v1389
        %v1391 = vsel %vm1291, %v916, 0.0
        %v1392 = vadd.f32 %v1390, %v1391
        %v1393 = vsel %vm1291, %v919, 0.0
        %v1394 = vadd.f32 %v1392, %v1393
        %v1395 = vsel %vm1291, %v924, 0.0
        %v1396 = vadd.f32 %v1394, %v1395
        %v1397 = vsel %vm1291, %v927, 0.0
        %v1398 = vadd.f32 %v1396, %v1397
        %v1399 = vsel %vm1291, %v932, 0.0
        %v1400 = vadd.f32 %v1398, %v1399
        %v1401 = vsel %vm1291, %v935, 0.0
        %v1402 = vadd.f32 %v1400, %v1401
        %v1403 = vsel %vm1291, %v940, 0.0
        %v1404 = vadd.f32 %v1402, %v1403
        %v1405 = vsel %vm1291, %v943, 0.0
        %v1406 = vadd.f32 %v1404, %v1405
        %v1407 = vsel %vm1291, %v948, 0.0
        %v1408 = vadd.f32 %v1406, %v1407
        %v1409 = vsel %vm1291, %v951, 0.0
        %v1410 = vadd.f32 %v1408, %v1409
        %v1411 = vsel %vm1291, %v956, 0.0
        %v1412 = vadd.f32 %v1410, %v1411
        %v1413 = vsel %vm1291, %v959, 0.0
        %v1414 = vadd.f32 %v1412, %v1413
        %v1415 = vsel %vm1291, %v964, 0.0
        %v1416 = vadd.f32 %v1414, %v1415
        %v1417 = vsel %vm1291, %v967, 0.0
        %v1418 = vadd.f32 %v1416, %v1417
        %v1419 = vrot.slane %v1418, 4
        %v1420 = vadd.f32 %v1418, %v1419
        %v1421 = vrot.slane %v1420, 2
        %v1422 = vadd.f32 %v1420, %v1421
        %v1423 = vrot.slane %v1422, 1
        %v1424 = vadd.f32 %v1422, %v1423
        %1425 = vst.msk [vmem:[%s256] sm:$0xff] %vm1291, %v1424
        %v1426 = vmul.f32 %v716, %v716
        %v1427 = vmul.f32 %v719, %v719
        %v1428 = vmul.f32 %v724, %v724
        %v1429 = vmul.f32 %v727, %v727
        %v1430 = vmul.f32 %v732, %v732
        %v1431 = vmul.f32 %v735, %v735
        %v1432 = vmul.f32 %v740, %v740
        %v1433 = vmul.f32 %v743, %v743
        %v1434 = vmul.f32 %v748, %v748
        %v1435 = vmul.f32 %v751, %v751
        %v1436 = vmul.f32 %v756, %v756
        %v1437 = vmul.f32 %v759, %v759
        %v1438 = vmul.f32 %v764, %v764
        %v1439 = vmul.f32 %v767, %v767
        %v1440 = vmul.f32 %v772, %v772
        %v1441 = vmul.f32 %v775, %v775
        %v1442 = vmul.f32 %v780, %v780
        %v1443 = vmul.f32 %v783, %v783
        %v1444 = vmul.f32 %v788, %v788
        %v1445 = vmul.f32 %v791, %v791
        %v1446 = vmul.f32 %v796, %v796
        %v1447 = vmul.f32 %v799, %v799
        %v1448 = vmul.f32 %v804, %v804
        %v1449 = vmul.f32 %v807, %v807
        %v1450 = vmul.f32 %v812, %v812
        %v1451 = vmul.f32 %v815, %v815
        %v1452 = vmul.f32 %v820, %v820
        %v1453 = vmul.f32 %v823, %v823
        %v1454 = vmul.f32 %v828, %v828
        %v1455 = vmul.f32 %v831, %v831
        %v1456 = vmul.f32 %v836, %v836
        %v1457 = vmul.f32 %v839, %v839
        %v1458 = vmul.f32 %v844, %v844
        %v1459 = vmul.f32 %v847, %v847
        %v1460 = vmul.f32 %v852, %v852
        %v1461 = vmul.f32 %v855, %v855
        %v1462 = vmul.f32 %v860, %v860
        %v1463 = vmul.f32 %v863, %v863
        %v1464 = vmul.f32 %v868, %v868
        %v1465 = vmul.f32 %v871, %v871
        %v1466 = vmul.f32 %v876, %v876
        %v1467 = vmul.f32 %v879, %v879
        %v1468 = vmul.f32 %v884, %v884
        %v1469 = vmul.f32 %v887, %v887
        %v1470 = vmul.f32 %v892, %v892
        %v1471 = vmul.f32 %v895, %v895
        %v1472 = vmul.f32 %v900, %v900
        %v1473 = vmul.f32 %v903, %v903
        %v1474 = vmul.f32 %v908, %v908
        %v1475 = vmul.f32 %v911, %v911
        %v1476 = vmul.f32 %v916, %v916
        %v1477 = vmul.f32 %v919, %v919
        %v1478 = vmul.f32 %v924, %v924
        %v1479 = vmul.f32 %v927, %v927
        %v1480 = vmul.f32 %v932, %v932
        %v1481 = vmul.f32 %v935, %v935
        %v1482 = vmul.f32 %v940, %v940
        %v1483 = vmul.f32 %v943, %v943
        %v1484 = vmul.f32 %v948, %v948
        %v1485 = vmul.f32 %v951, %v951
        %v1486 = vmul.f32 %v956, %v956
        %v1487 = vmul.f32 %v959, %v959
        %v1488 = vmul.f32 %v964, %v964
        %v1489 = vmul.f32 %v967, %v967
        %v1490 = vsel %vm1291, %v1426, 0.0
        %v1491 = vsel %vm1291, %v1427, 0.0
        %v1492 = vadd.f32 %v1490, %v1491
        %v1493 = vsel %vm1291, %v1428, 0.0
        %v1494 = vadd.f32 %v1492, %v1493
        %v1495 = vsel %vm1291, %v1429, 0.0
        %v1496 = vadd.f32 %v1494, %v1495
        %v1497 = vsel %vm1291, %v1430, 0.0
        %v1498 = vadd.f32 %v1496, %v1497
        %v1499 = vsel %vm1291, %v1431, 0.0
        %v1500 = vadd.f32 %v1498, %v1499
        %v1501 = vsel %vm1291, %v1432, 0.0
        %v1502 = vadd.f32 %v1500, %v1501
        %v1503 = vsel %vm1291, %v1433, 0.0
        %v1504 = vadd.f32 %v1502, %v1503
        %v1505 = vsel %vm1291, %v1434, 0.0
        %v1506 = vadd.f32 %v1504, %v1505
        %v1507 = vsel %vm1291, %v1435, 0.0
        %v1508 = vadd.f32 %v1506, %v1507
        %v1509 = vsel %vm1291, %v1436, 0.0
        %v1510 = vadd.f32 %v1508, %v1509
        %v1511 = vsel %vm1291, %v1437, 0.0
        %v1512 = vadd.f32 %v1510, %v1511
        %v1513 = vsel %vm1291, %v1438, 0.0
        %v1514 = vadd.f32 %v1512, %v1513
        %v1515 = vsel %vm1291, %v1439, 0.0
        %v1516 = vadd.f32 %v1514, %v1515
        %v1517 = vsel %vm1291, %v1440, 0.0
        %v1518 = vadd.f32 %v1516, %v1517
        %v1519 = vsel %vm1291, %v1441, 0.0
        %v1520 = vadd.f32 %v1518, %v1519
        %v1521 = vsel %vm1291, %v1442, 0.0
        %v1522 = vadd.f32 %v1520, %v1521
        %v1523 = vsel %vm1291, %v1443, 0.0
        %v1524 = vadd.f32 %v1522, %v1523
        %v1525 = vsel %vm1291, %v1444, 0.0
        %v1526 = vadd.f32 %v1524, %v1525
        %v1527 = vsel %vm1291, %v1445, 0.0
        %v1528 = vadd.f32 %v1526, %v1527
        %v1529 = vsel %vm1291, %v1446, 0.0
        %v1530 = vadd.f32 %v1528, %v1529
        %v1531 = vsel %vm1291, %v1447, 0.0
        %v1532 = vadd.f32 %v1530, %v1531
        %v1533 = vsel %vm1291, %v1448, 0.0
        %v1534 = vadd.f32 %v1532, %v1533
        %v1535 = vsel %vm1291, %v1449, 0.0
        %v1536 = vadd.f32 %v1534, %v1535
        %v1537 = vsel %vm1291, %v1450, 0.0
        %v1538 = vadd.f32 %v1536, %v1537
        %v1539 = vsel %vm1291, %v1451, 0.0
        %v1540 = vadd.f32 %v1538, %v1539
        %v1541 = vsel %vm1291, %v1452, 0.0
        %v1542 = vadd.f32 %v1540, %v1541
        %v1543 = vsel %vm1291, %v1453, 0.0
        %v1544 = vadd.f32 %v1542, %v1543
        %v1545 = vsel %vm1291, %v1454, 0.0
        %v1546 = vadd.f32 %v1544, %v1545
        %v1547 = vsel %vm1291, %v1455, 0.0
        %v1548 = vadd.f32 %v1546, %v1547
        %v1549 = vsel %vm1291, %v1456, 0.0
        %v1550 = vadd.f32 %v1548, %v1549
        %v1551 = vsel %vm1291, %v1457, 0.0
        %v1552 = vadd.f32 %v1550, %v1551
        %v1553 = vsel %vm1291, %v1458, 0.0
        %v1554 = vadd.f32 %v1552, %v1553
        %v1555 = vsel %vm1291, %v1459, 0.0
        %v1556 = vadd.f32 %v1554, %v1555
        %v1557 = vsel %vm1291, %v1460, 0.0
        %v1558 = vadd.f32 %v1556, %v1557
        %v1559 = vsel %vm1291, %v1461, 0.0
        %v1560 = vadd.f32 %v1558, %v1559
        %v1561 = vsel %vm1291, %v1462, 0.0
        %v1562 = vadd.f32 %v1560, %v1561
        %v1563 = vsel %vm1291, %v1463, 0.0
        %v1564 = vadd.f32 %v1562, %v1563
        %v1565 = vsel %vm1291, %v1464, 0.0
        %v1566 = vadd.f32 %v1564, %v1565
        %v1567 = vsel %vm1291, %v1465, 0.0
        %v1568 = vadd.f32 %v1566, %v1567
        %v1569 = vsel %vm1291, %v1466, 0.0
        %v1570 = vadd.f32 %v1568, %v1569
        %v1571 = vsel %vm1291, %v1467, 0.0
        %v1572 = vadd.f32 %v1570, %v1571
        %v1573 = vsel %vm1291, %v1468, 0.0
        %v1574 = vadd.f32 %v1572, %v1573
        %v1575 = vsel %vm1291, %v1469, 0.0
        %v1576 = vadd.f32 %v1574, %v1575
        %v1577 = vsel %vm1291, %v1470, 0.0
        %v1578 = vadd.f32 %v1576, %v1577
        %v1579 = vsel %vm1291, %v1471, 0.0
        %v1580 = vadd.f32 %v1578, %v1579
        %v1581 = vsel %vm1291, %v1472, 0.0
        %v1582 = vadd.f32 %v1580, %v1581
        %v1583 = vsel %vm1291, %v1473, 0.0
        %v1584 = vadd.f32 %v1582, %v1583
        %v1585 = vsel %vm1291, %v1474, 0.0
        %v1586 = vadd.f32 %v1584, %v1585
        %v1587 = vsel %vm1291, %v1475, 0.0
        %v1588 = vadd.f32 %v1586, %v1587
        %v1589 = vsel %vm1291, %v1476, 0.0
        %v1590 = vadd.f32 %v1588, %v1589
        %v1591 = vsel %vm1291, %v1477, 0.0
        %v1592 = vadd.f32 %v1590, %v1591
        %v1593 = vsel %vm1291, %v1478, 0.0
        %v1594 = vadd.f32 %v1592, %v1593
        %v1595 = vsel %vm1291, %v1479, 0.0
        %v1596 = vadd.f32 %v1594, %v1595
        %v1597 = vsel %vm1291, %v1480, 0.0
        %v1598 = vadd.f32 %v1596, %v1597
        %v1599 = vsel %vm1291, %v1481, 0.0
        %v1600 = vadd.f32 %v1598, %v1599
        %v1601 = vsel %vm1291, %v1482, 0.0
        %v1602 = vadd.f32 %v1600, %v1601
        %v1603 = vsel %vm1291, %v1483, 0.0
        %v1604 = vadd.f32 %v1602, %v1603
        %v1605 = vsel %vm1291, %v1484, 0.0
        %v1606 = vadd.f32 %v1604, %v1605
        %v1607 = vsel %vm1291, %v1485, 0.0
        %v1608 = vadd.f32 %v1606, %v1607
        %v1609 = vsel %vm1291, %v1486, 0.0
        %v1610 = vadd.f32 %v1608, %v1609
        %v1611 = vsel %vm1291, %v1487, 0.0
        %v1612 = vadd.f32 %v1610, %v1611
        %v1613 = vsel %vm1291, %v1488, 0.0
        %v1614 = vadd.f32 %v1612, %v1613
        %v1615 = vsel %vm1291, %v1489, 0.0
        %v1616 = vadd.f32 %v1614, %v1615
        %v1617 = vrot.slane %v1616, 4
        %v1618 = vadd.f32 %v1616, %v1617
        %v1619 = vrot.slane %v1618, 2
        %v1620 = vadd.f32 %v1618, %v1619
        %v1621 = vrot.slane %v1620, 1
        %v1622 = vadd.f32 %v1620, %v1621
        %1623 = vst.msk [vmem:[%s263] sm:$0xff] %vm1291, %v1622
        %s1624 = smul.u32 64, %s24
        %p1625 = scmp.lt.s32.totalorder %s1624, 127
        %s1626 = scalar_select %p1625, %s1624, 127
        %s1627 = smul.addr %s1626, 4
        %s1628 = scalar_lea.vmem %s4, %s1627
        %s1629 = sand.u32 %s147, 1
        %s1630 = scalar_lea.sflag [#allocation3], %s1629
        %s1631 = sand.u32 %s147, 1
        %s1632 = smul.addr %s1631, 8
        %s1633 = scalar_lea.vmem [#allocation2], %s1632
        %s1634 = sand.u32 %s173, 1
        %s1635 = scalar_lea.sflag [#allocation5], %s1634
        %s1636 = sand.u32 %s173, 1
        %s1637 = smul.addr %s1636, 8
        %s1638 = scalar_lea.vmem [#allocation4], %s1637
        // Predicated region
        $region37: #{tpu_custom_call.1} parent=35 // pred_check
          %p1639 = pneg %p131
        $region38: #{tpu_custom_call.1} parent=35 // pred_check_branch
          %1641 = sbr.rel (%p1639) target = $region40
        $region39: #{tpu_custom_call.1} parent=35 // pred_region
          %s1642 = smul.u32 64, %s24
        $region40: #{tpu_custom_call.1} parent=35 // pred_fallthru
          _
        // Predicated region
        $region41: #{tpu_custom_call.1} parent=35 // pred_check
          %p1643 = pneg %p157
        $region42: #{tpu_custom_call.1} parent=35 // pred_check_branch
          %1645 = sbr.rel (%p1643) target = $region44
        $region43: #{tpu_custom_call.1} parent=35 // pred_region
          %s1647 = ssub.s32 128, 128
          %1648 = vsyncadd %s1630, %s1647
          %s1649 = smul.addr %s24, 128
          %s1650 = scalar_lea.hbm %s5, %s1649
          %s1652 = sshll.u32 %s1633, 4
          %s1653 = int_to_ptr.vmem [resolvable:$true] %s1652
          %1655 = dma.vmem_to_hbm [thread:$0]  %s1653, 128, %s1650, %s1630
        $region44: #{tpu_custom_call.1} parent=35 // pred_fallthru
          _
        // Predicated region
        $region45: #{tpu_custom_call.1} parent=35 // pred_check
          %p1656 = pneg %p183
        $region46: #{tpu_custom_call.1} parent=35 // pred_check_branch
          %1658 = sbr.rel (%p1656) target = $region48
        $region47: #{tpu_custom_call.1} parent=35 // pred_region
          %s1660 = ssub.s32 128, 128
          %1661 = vsyncadd %s1635, %s1660
          %s1662 = smul.addr %s24, 128
          %s1663 = scalar_lea.hbm %s6, %s1662
          %s1665 = sshll.u32 %s1638, 4
          %s1666 = int_to_ptr.vmem [resolvable:$true] %s1665
          %1668 = dma.vmem_to_hbm [thread:$0]  %s1666, 128, %s1663, %s1635
        $region48: #{tpu_custom_call.1} parent=35 // pred_fallthru
          _
      $region36: #{tpu_custom_call.1} parent=5 // pred_fallthru
        _
      %p1669 = scmp.le.s32.totalorder 2, %s19
      // Predicated region
      $region49: #{tpu_custom_call.1} parent=5 // pred_check
        %p1670 = pneg %p1669
      $region50: #{tpu_custom_call.1} parent=5 // pred_check_branch
        %1672 = sbr.rel (%p1670) target = $region52
      $region51: #{tpu_custom_call.1} parent=5 // pred_region
        %s1673 = ssub.s32 %s19, 2
        // Predicated region
        $region53: #{tpu_custom_call.1} parent=51 // pred_check
          %p1674 = pneg %p137
        $region54: #{tpu_custom_call.1} parent=51 // pred_check_branch
          %1676 = sbr.rel (%p1674) target = $region56
        $region55: #{tpu_custom_call.1} parent=51 // pred_region
          %s1677 = smul.u32 64, %s25
          %p1678 = scmp.lt.s32.totalorder %s1677, 127
          %s1679 = scalar_select %p1678, %s1677, 127
          %s1680 = smul.addr %s1679, 4
          %s1681 = scalar_lea.vmem %s4, %s1680
        $region56: #{tpu_custom_call.1} parent=51 // pred_fallthru
          _
        // Predicated region
        $region57: #{tpu_custom_call.1} parent=51 // pred_check
          %p1682 = pneg %p163
        $region58: #{tpu_custom_call.1} parent=51 // pred_check_branch
          %1684 = sbr.rel (%p1682) target = $region60
        $region59: #{tpu_custom_call.1} parent=51 // pred_region
          %s1685 = sand.u32 %s148, 1
          %s1686 = scalar_lea.sflag [#allocation3], %s1685
          %s1687 = sand.u32 %s148, 1
          %s1688 = smul.addr %s1687, 8
          %s1689 = scalar_lea.vmem [#allocation2], %s1688
          %1690 = dma.done %s1686, 128
        $region60: #{tpu_custom_call.1} parent=51 // pred_fallthru
          _
        // Predicated region
        $region61: #{tpu_custom_call.1} parent=51 // pred_check
          %p1691 = pneg %p189
        $region62: #{tpu_custom_call.1} parent=51 // pred_check_branch
          %1693 = sbr.rel (%p1691) target = $region64
        $region63: #{tpu_custom_call.1} parent=51 // pred_region
          %s1694 = sand.u32 %s174, 1
          %s1695 = scalar_lea.sflag [#allocation5], %s1694
          %s1696 = sand.u32 %s174, 1
          %s1697 = smul.addr %s1696, 8
          %s1698 = scalar_lea.vmem [#allocation4], %s1697
          %1699 = dma.done %s1695, 128
        $region64: #{tpu_custom_call.1} parent=51 // pred_fallthru
          _
      $region52: #{tpu_custom_call.1} parent=5 // pred_fallthru
        _
    $region6: #{tpu_custom_call.1} parent=1 // loop_footer
      %s23 = sadd.s32 1, %s19
    $region7: #{tpu_custom_call.1} parent=1 // loop_footer_branch
      %18 = sbr.rel target = $region3
    $region8: #{tpu_custom_call.1} parent=1 // loop_exit
      _
    %1700 = vsyncpa [#allocation3], 1
    %s1701 = scalar_lea.sflag [#allocation3], 1
    %1702 = vsyncpa %s1701, 1
    %1703 = vsyncpa [#allocation5], 1
    %s1704 = scalar_lea.sflag [#allocation5], 1
    %1705 = vsyncpa %s1704, 1

</llo_original>
